<compile_context>
chip_gen: v7x
topology: tpu7x:2x2x1
jax: 0.10.0
libtpu: 0.0.40
codegen_flags: <defaults>
</compile_context>

<pallas_src>
import functools
import math

import jax
import jax.numpy as jnp
from jax.experimental import pallas as pl
from jax.experimental.pallas import tpu as pltpu


def _dc_kernel(x_ref, ks_ref, m_ref, fwdw_ref, invw_ref, ch_ref, sh_ref, chps_ref,
               o_ref, *, compute_dtype):
    """Fused ortho-DFT2 -> data-consistency -> ortho-IDFT2 (real part) for TB images."""
    TB, H, W = x_ref.shape
    cd = compute_dtype
    dot = functools.partial(jnp.dot, preferred_element_type=jnp.float32)

    # Grid-constant operands (constant index maps: DMA'd once, reused across the grid).
    fwdw = fwdw_ref[...]           # (W, 2W)  = [cw | -sw] / sqrt(W)
    invw = invw_ref[...]           # (2W, Wp) = [[cw], [-sw]] / sqrt(W), zero-padded cols
    ch = ch_ref[...]               # (H, H)   cos / sqrt(H)
    sh = sh_ref[...]               # (H, H)   sin / sqrt(H)
    chps = chps_ref[...]           # (H, H)   (cos + sin) / sqrt(H)   (Gauss trick)
    m = m_ref[...]                 # (H, W)   f32 sampling mask

    # ---- forward DFT, W side: one (TB*H, W) @ (W, 2W) matmul for the whole block ----
    x2 = x_ref[...].astype(cd).reshape(TB * H, W)
    fw = dot(x2, fwdw).astype(cd)               # (TB*H, 2W): [:, :W]=Re(A), [:, W:]=Im(A)

    # ---- per-image pipeline: live f32 temps stay (H, W)-sized, no basis broadcasts ----
    for b in range(TB):
        ar = fw[b * H:(b + 1) * H, :W]
        ai = fw[b * H:(b + 1) * H, W:]

        # forward DFT, H side (Gauss 3-matmul): Y = (ch - i sh) @ (ar + i ai)
        m1 = dot(ch, ar)
        m2 = dot(sh, ai)
        m3 = dot(chps, ai - ar)
        yr = m1 + m2                            # Re(Y) = ch@ar + sh@ai
        yi = m3 + m1 - m2                       # Im(Y) = ch@ai - sh@ar

        # data consistency (f32): U = Y + mask * (ks - Y)  ==  m*ks + (1-m)*Y
        ksb = ks_ref[b]                         # (2, H, W) f32, planar real/imag
        ur = yr + m * (ksb[0] - yr)
        ui = yi + m * (ksb[1] - yi)

        # inverse DFT, H side (Gauss): B = (ch + i sh) @ (ur + i ui)
        n1 = dot(ch, ur.astype(cd))
        n2 = dot(sh, ui.astype(cd))
        n3 = dot(chps, (ur + ui).astype(cd))
        br = n1 - n2                            # Re(B) = ch@ur - sh@ui
        bi = n3 - n1 - n2                       # Im(B) = ch@ui + sh@ur

        # inverse DFT, W side, real part only: one K=2W matmul against the stacked basis.
        bri = jnp.concatenate([br.astype(cd), bi.astype(cd)], axis=1)   # (H, 2W)
        o_ref[b] = dot(bri, invw).astype(o_ref.dtype)                   # (H, Wp)


def _vmem_capacity_bytes():
    try:
        return int(pltpu.get_tpu_info().vmem_capacity_bytes)
    except Exception:
        return 64 * 1024 * 1024      # conservative (v7x-sized) fallback


def _pick_batch(n, h, w, wp, cd_bytes, *, max_tb=16, min_grid=4):
    """Images per grid step: as many as the per-generation VMEM budget allows while keeping
    the grid >= min_grid steps so the BlockSpec pipeline can overlap HBM traffic."""
    cap = _vmem_capacity_bytes()
    budget = int(0.55 * cap)                       # headroom for compiler internal scratch
    # Double-buffered pipelined blocks per image (x + planar k-space + padded output) plus
    # the compute-dtype forward-W slab (TB-scaled).
    per_img = 2 * (4 * h * w + 8 * h * w + 4 * h * wp) + 2 * h * w * cd_bytes
    # Grid-constant operands are also double-buffered by the pipeline; plus a fixed
    # allowance for the per-image f32 temporaries of the unrolled inner loop.
    const = 2 * (4 * h * w + 2 * w * w * cd_bytes + 2 * w * wp * cd_bytes
                 + 3 * h * h * cd_bytes)
    const += 16 * h * max(w, wp) * 4
    avail = max(budget - const, per_img)
    tb = max(1, min(max_tb, n, int(avail // per_img)))
    if n >= min_grid:
        tb = min(tb, -(-n // min_grid))            # keep at least min_grid grid steps
    return tb, cap


def data_consistency_layer(predicted_img, us_kspace, us_mask, *,
                           compute_dtype=jnp.bfloat16, max_images_per_step=16):
    """predicted_img [B,S,H,W]; us_kspace [B,S,H,W,2]; us_mask broadcastable to [1,H,W,1]."""
    B, S, H, W = predicted_img.shape
    N = B * S
    cd = jnp.dtype(compute_dtype)

    # Lane-dense output width (pad the inverse-basis columns; crop after the kernel).
    Wp = W if W % 128 == 0 else ((W + 127) // 128) * 128

    x = predicted_img.reshape(N, H, W).astype(jnp.float32)
    # Planar real/imag layout (N, 2, H, W): one transpose instead of two sliced copies.
    ks = jnp.transpose(us_kspace.reshape(N, H, W, 2).astype(jnp.float32), (0, 3, 1, 2))
    mask = jnp.broadcast_to(us_mask, (1, H, W, 1))[0, :, :, 0].astype(jnp.float32)

    # Ortho-scaled symmetric DFT bases (angles from exact integer k*m mod N).
    kk_h = (jnp.outer(jnp.arange(H), jnp.arange(H)) % H).astype(jnp.float32)
    kk_w = (jnp.outer(jnp.arange(W), jnp.arange(W)) % W).astype(jnp.float32)
    ch_f = jnp.cos((2.0 * jnp.pi / H) * kk_h) * (1.0 / math.sqrt(H))
    sh_f = jnp.sin((2.0 * jnp.pi / H) * kk_h) * (1.0 / math.sqrt(H))
    cw_f = jnp.cos((2.0 * jnp.pi / W) * kk_w) * (1.0 / math.sqrt(W))
    sw_f = jnp.sin((2.0 * jnp.pi / W) * kk_w) * (1.0 / math.sqrt(W))
    fwdw_f = jnp.concatenate([cw_f, -sw_f], axis=1)            # (W, 2W)  forward basis
    invw_f = jnp.concatenate([cw_f, -sw_f], axis=0)            # (2W, W)  inverse (real part)
    if Wp != W:
        invw_f = jnp.pad(invw_f, ((0, 0), (0, Wp - W)))
    ch, sh = ch_f.astype(cd), sh_f.astype(cd)
    chps = (ch_f + sh_f).astype(cd)
    fwdw, invw = fwdw_f.astype(cd), invw_f.astype(cd)

    tb, vmem_cap = _pick_batch(N, H, W, Wp, cd.itemsize, max_tb=max_images_per_step)
    n_pad = -(-N // tb) * tb
    if n_pad != N:                                 # pad with dummy images, crop afterwards
        x = jnp.pad(x, ((0, n_pad - N), (0, 0), (0, 0)))
        ks = jnp.pad(ks, ((0, n_pad - N), (0, 0), (0, 0), (0, 0)))
    grid = (n_pad // tb,)

    kernel = functools.partial(_dc_kernel, compute_dtype=cd)
    out = pl.pallas_call(
        kernel,
        out_shape=jax.ShapeDtypeStruct((n_pad, H, Wp), jnp.float32),
        grid_spec=pltpu.PrefetchScalarGridSpec(
            num_scalar_prefetch=0,
            grid=grid,
            in_specs=[
                pl.BlockSpec((tb, H, W), lambda i: (i, 0, 0)),        # predicted images
                pl.BlockSpec((tb, 2, H, W), lambda i: (i, 0, 0, 0)),  # k-space (planar)
                pl.BlockSpec((H, W), lambda i: (0, 0)),               # mask (grid-const)
                pl.BlockSpec((W, 2 * W), lambda i: (0, 0)),           # [cw | -sw]/sqrt(W)
                pl.BlockSpec((2 * W, Wp), lambda i: (0, 0)),          # [[cw],[-sw]]/sqrt(W)
                pl.BlockSpec((H, H), lambda i: (0, 0)),               # cos_H/sqrt(H)
                pl.BlockSpec((H, H), lambda i: (0, 0)),               # sin_H/sqrt(H)
                pl.BlockSpec((H, H), lambda i: (0, 0)),               # (cos_H+sin_H)/sqrt(H)
            ],
            out_specs=pl.BlockSpec((tb, H, Wp), lambda i: (i, 0, 0)),
        ),
        compiler_params=pltpu.CompilerParams(
            dimension_semantics=("parallel",),
            vmem_limit_bytes=min(int(0.75 * vmem_cap), 128 * 1024 * 1024),
        ),
    )(x, ks, mask, fwdw, invw, ch, sh, chps)

    return out[:N, :, :W].reshape(B, S, H, W)


def _reference(predicted_img, us_kspace, us_mask):
    """Pure-JAX reference mirroring the PyTorch forward (ortho fft2/ifft2, real output)."""
    pred = predicted_img.astype(jnp.float32)
    ksc = us_kspace[..., 0] + 1j * us_kspace[..., 1]
    H, W = pred.shape[-2:]
    mask = jnp.broadcast_to(us_mask, (1, H, W, 1))[0, :, :, 0]
    k_pred = jnp.fft.fft2(pred, norm="ortho")
    updated = mask * ksc + (1.0 - mask) * k_pred
    return jnp.real(jnp.fft.ifft2(updated, norm="ortho")).astype(jnp.float32)


if __name__ == "__main__":
    B, S, H, W = 2, 4, 16, 16
    key = jax.random.PRNGKey(0)
    k1, k2, k3 = jax.random.split(key, 3)

    predicted_img = jax.random.normal(k1, (B, S, H, W), dtype=jnp.float32)
    us_kspace = jax.random.normal(k2, (B, S, H, W, 2), dtype=jnp.float32)
    us_mask = (jax.random.uniform(k3, (1, H, W, 1)) < 0.4).astype(jnp.float32)

    ref = _reference(predicted_img, us_kspace, us_mask)

    # Full-f32 matmul path: tightly validates the fused DFT / DC / IDFT algorithm.
    out_f32 = jax.block_until_ready(
        data_consistency_layer(predicted_img, us_kspace, us_mask,
                               compute_dtype=jnp.float32))
    assert out_f32.shape == (B, S, H, W) and out_f32.dtype == jnp.float32
    err_f32 = float(jnp.max(jnp.abs(out_f32 - ref)))
    assert err_f32 < 1e-3, f"f32 path mismatch vs reference: {err_f32}"

    # Default bf16-operand path (MXU-native, f32 accumulation, f32 data-consistency mix).
    out_bf16 = jax.block_until_ready(
        data_consistency_layer(predicted_img, us_kspace, us_mask))
    assert out_bf16.shape == (B, S, H, W) and out_bf16.dtype == jnp.float32
    err_bf16 = float(jnp.max(jnp.abs(out_bf16 - ref)))
    assert err_bf16 < 2e-1, f"bf16 path mismatch vs reference: {err_bf16}"

    print("KERNEL_OK")
</pallas_src>

<mosaic_0001>
module attributes {stable_mosaic.version = 11 : i64} {
  func.func @_dc_kernel(%arg0: i32, %arg1: memref<2x16x16xf32, #tpu.memory_space<vmem>>, %arg2: memref<2x2x16x16xf32, #tpu.memory_space<vmem>>, %arg3: memref<16x16xf32, #tpu.memory_space<vmem>>, %arg4: memref<16x32xf32, #tpu.memory_space<vmem>>, %arg5: memref<32x128xf32, #tpu.memory_space<vmem>>, %arg6: memref<16x16xf32, #tpu.memory_space<vmem>>, %arg7: memref<16x16xf32, #tpu.memory_space<vmem>>, %arg8: memref<16x16xf32, #tpu.memory_space<vmem>>, %arg9: memref<2x16x128xf32, #tpu.memory_space<vmem>>) attributes {dimension_semantics = [#tpu.dimension_semantics<parallel>], iteration_bounds = array<i64: 4>, scalar_prefetch = 0 : i64, scratch_operands = 0 : i64, tpu.core_type = #tpu.core_type<tc>, window_params = [{transform_indices = @transform_0, window_bounds = array<i64: 2, 16, 16>}, {transform_indices = @transform_1, window_bounds = array<i64: 2, 2, 16, 16>}, {pipeline_mode = #tpu.pipeline_mode<synchronous>, transform_indices = @transform_2, window_bounds = array<i64: 16, 16>}, {pipeline_mode = #tpu.pipeline_mode<synchronous>, transform_indices = @transform_3, window_bounds = array<i64: 16, 32>}, {pipeline_mode = #tpu.pipeline_mode<synchronous>, transform_indices = @transform_4, window_bounds = array<i64: 32, 128>}, {pipeline_mode = #tpu.pipeline_mode<synchronous>, transform_indices = @transform_5, window_bounds = array<i64: 16, 16>}, {pipeline_mode = #tpu.pipeline_mode<synchronous>, transform_indices = @transform_6, window_bounds = array<i64: 16, 16>}, {pipeline_mode = #tpu.pipeline_mode<synchronous>, transform_indices = @transform_7, window_bounds = array<i64: 16, 16>}, {transform_indices = @transform_8, window_bounds = array<i64: 2, 16, 128>}]} {
    %c0 = arith.constant 0 : index
    %c0_0 = arith.constant 0 : index
    %0 = vector.load %arg4[%c0, %c0_0] : memref<16x32xf32, #tpu.memory_space<vmem>>, vector<16x32xf32>
    %c0_1 = arith.constant 0 : index
    %c0_2 = arith.constant 0 : index
    %1 = vector.load %arg5[%c0_1, %c0_2] : memref<32x128xf32, #tpu.memory_space<vmem>>, vector<32x128xf32>
    %c0_3 = arith.constant 0 : index
    %c0_4 = arith.constant 0 : index
    %2 = vector.load %arg6[%c0_3, %c0_4] : memref<16x16xf32, #tpu.memory_space<vmem>>, vector<16x16xf32>
    %c0_5 = arith.constant 0 : index
    %c0_6 = arith.constant 0 : index
    %3 = vector.load %arg7[%c0_5, %c0_6] : memref<16x16xf32, #tpu.memory_space<vmem>>, vector<16x16xf32>
    %c0_7 = arith.constant 0 : index
    %c0_8 = arith.constant 0 : index
    %4 = vector.load %arg8[%c0_7, %c0_8] : memref<16x16xf32, #tpu.memory_space<vmem>>, vector<16x16xf32>
    %c0_9 = arith.constant 0 : index
    %c0_10 = arith.constant 0 : index
    %5 = vector.load %arg3[%c0_9, %c0_10] : memref<16x16xf32, #tpu.memory_space<vmem>>, vector<16x16xf32>
    %c0_11 = arith.constant 0 : index
    %c0_12 = arith.constant 0 : index
    %c0_13 = arith.constant 0 : index
    %6 = vector.load %arg1[%c0_11, %c0_12, %c0_13] : memref<2x16x16xf32, #tpu.memory_space<vmem>>, vector<2x16x16xf32>
    %7 = vector.shape_cast %6 : vector<2x16x16xf32> to vector<32x16xf32>
    %cst = arith.constant dense<0.000000e+00> : vector<32x32xf32>
    %8 = tpu.matmul %7, %0, %cst {dimension_numbers = #tpu.dot_dimension_numbers<[1], [0], [0], [1], [0, 0, 1, 1], [], []>} : vector<32x16xf32>, vector<16x32xf32>, vector<32x32xf32> -> vector<32x32xf32>
    %9 = vector.extract_strided_slice %8 {offsets = [0, 0], sizes = [16, 16], strides = [1, 1]} : vector<32x32xf32> to vector<16x16xf32>
    %10 = vector.extract_strided_slice %8 {offsets = [0, 16], sizes = [16, 16], strides = [1, 1]} : vector<32x32xf32> to vector<16x16xf32>
    %cst_14 = arith.constant dense<0.000000e+00> : vector<16x16xf32>
    %11 = tpu.matmul %2, %9, %cst_14 {dimension_numbers = #tpu.dot_dimension_numbers<[1], [0], [0], [1], [0, 0, 1, 1], [], []>} : vector<16x16xf32>, vector<16x16xf32>, vector<16x16xf32> -> vector<16x16xf32>
    %cst_15 = arith.constant dense<0.000000e+00> : vector<16x16xf32>
    %12 = tpu.matmul %3, %10, %cst_15 {dimension_numbers = #tpu.dot_dimension_numbers<[1], [0], [0], [1], [0, 0, 1, 1], [], []>} : vector<16x16xf32>, vector<16x16xf32>, vector<16x16xf32> -> vector<16x16xf32>
    %13 = arith.subf %10, %9 : vector<16x16xf32>
    %cst_16 = arith.constant dense<0.000000e+00> : vector<16x16xf32>
    %14 = tpu.matmul %4, %13, %cst_16 {dimension_numbers = #tpu.dot_dimension_numbers<[1], [0], [0], [1], [0, 0, 1, 1], [], []>} : vector<16x16xf32>, vector<16x16xf32>, vector<16x16xf32> -> vector<16x16xf32>
    %15 = arith.addf %11, %12 : vector<16x16xf32>
    %16 = arith.addf %14, %11 : vector<16x16xf32>
    %17 = arith.subf %16, %12 : vector<16x16xf32>
    %c0_17 = arith.constant 0 : index
    %c0_18 = arith.constant 0 : index
    %c0_19 = arith.constant 0 : index
    %c0_20 = arith.constant 0 : index
    %18 = vector.load %arg2[%c0_17, %c0_18, %c0_19, %c0_20] : memref<2x2x16x16xf32, #tpu.memory_space<vmem>>, vector<1x2x16x16xf32>
    %19 = vector.shape_cast %18 : vector<1x2x16x16xf32> to vector<2x16x16xf32>
    %20 = vector.extract_strided_slice %19 {offsets = [0, 0, 0], sizes = [1, 16, 16], strides = [1, 1, 1]} : vector<2x16x16xf32> to vector<1x16x16xf32>
    %21 = vector.shape_cast %20 : vector<1x16x16xf32> to vector<16x16xf32>
    %22 = arith.subf %21, %15 : vector<16x16xf32>
    %23 = arith.mulf %5, %22 : vector<16x16xf32>
    %24 = arith.addf %15, %23 : vector<16x16xf32>
    %25 = vector.extract_strided_slice %19 {offsets = [1, 0, 0], sizes = [1, 16, 16], strides = [1, 1, 1]} : vector<2x16x16xf32> to vector<1x16x16xf32>
    %26 = vector.shape_cast %25 : vector<1x16x16xf32> to vector<16x16xf32>
    %27 = arith.subf %26, %17 : vector<16x16xf32>
    %28 = arith.mulf %5, %27 : vector<16x16xf32>
    %29 = arith.addf %17, %28 : vector<16x16xf32>
    %cst_21 = arith.constant dense<0.000000e+00> : vector<16x16xf32>
    %30 = tpu.matmul %2, %24, %cst_21 {dimension_numbers = #tpu.dot_dimension_numbers<[1], [0], [0], [1], [0, 0, 1, 1], [], []>} : vector<16x16xf32>, vector<16x16xf32>, vector<16x16xf32> -> vector<16x16xf32>
    %cst_22 = arith.constant dense<0.000000e+00> : vector<16x16xf32>
    %31 = tpu.matmul %3, %29, %cst_22 {dimension_numbers = #tpu.dot_dimension_numbers<[1], [0], [0], [1], [0, 0, 1, 1], [], []>} : vector<16x16xf32>, vector<16x16xf32>, vector<16x16xf32> -> vector<16x16xf32>
    %32 = arith.addf %24, %29 : vector<16x16xf32>
    %cst_23 = arith.constant dense<0.000000e+00> : vector<16x16xf32>
    %33 = tpu.matmul %4, %32, %cst_23 {dimension_numbers = #tpu.dot_dimension_numbers<[1], [0], [0], [1], [0, 0, 1, 1], [], []>} : vector<16x16xf32>, vector<16x16xf32>, vector<16x16xf32> -> vector<16x16xf32>
    %34 = arith.subf %30, %31 : vector<16x16xf32>
    %35 = arith.subf %33, %30 : vector<16x16xf32>
    %36 = arith.subf %35, %31 : vector<16x16xf32>
    %37 = tpu.concatenate %34, %36 in 1 : vector<16x16xf32>, vector<16x16xf32> -> vector<16x32xf32>
    %cst_24 = arith.constant dense<0.000000e+00> : vector<16x128xf32>
    %38 = tpu.matmul %37, %1, %cst_24 {dimension_numbers = #tpu.dot_dimension_numbers<[1], [0], [0], [1], [0, 0, 1, 1], [], []>} : vector<16x32xf32>, vector<32x128xf32>, vector<16x128xf32> -> vector<16x128xf32>
    %c0_25 = arith.constant 0 : index
    %c0_26 = arith.constant 0 : index
    %c0_27 = arith.constant 0 : index
    %39 = vector.load %arg9[%c0_25, %c0_26, %c0_27] : memref<2x16x128xf32, #tpu.memory_space<vmem>>, vector<1x16x128xf32>
    %40 = vector.shape_cast %39 : vector<1x16x128xf32> to vector<16x128xf32>
    %41 = vector.shape_cast %38 : vector<16x128xf32> to vector<1x16x128xf32>
    tpu.vector_store %arg9[%c0_25, %c0_26, %c0_27], %41 {strides = array<i32>} : memref<2x16x128xf32, #tpu.memory_space<vmem>>, vector<1x16x128xf32>,
    %42 = vector.extract_strided_slice %8 {offsets = [16, 0], sizes = [16, 16], strides = [1, 1]} : vector<32x32xf32> to vector<16x16xf32>
    %43 = vector.extract_strided_slice %8 {offsets = [16, 16], sizes = [16, 16], strides = [1, 1]} : vector<32x32xf32> to vector<16x16xf32>
    %cst_28 = arith.constant dense<0.000000e+00> : vector<16x16xf32>
    %44 = tpu.matmul %2, %42, %cst_28 {dimension_numbers = #tpu.dot_dimension_numbers<[1], [0], [0], [1], [0, 0, 1, 1], [], []>} : vector<16x16xf32>, vector<16x16xf32>, vector<16x16xf32> -> vector<16x16xf32>
    %cst_29 = arith.constant dense<0.000000e+00> : vector<16x16xf32>
    %45 = tpu.matmul %3, %43, %cst_29 {dimension_numbers = #tpu.dot_dimension_numbers<[1], [0], [0], [1], [0, 0, 1, 1], [], []>} : vector<16x16xf32>, vector<16x16xf32>, vector<16x16xf32> -> vector<16x16xf32>
    %46 = arith.subf %43, %42 : vector<16x16xf32>
    %cst_30 = arith.constant dense<0.000000e+00> : vector<16x16xf32>
    %47 = tpu.matmul %4, %46, %cst_30 {dimension_numbers = #tpu.dot_dimension_numbers<[1], [0], [0], [1], [0, 0, 1, 1], [], []>} : vector<16x16xf32>, vector<16x16xf32>, vector<16x16xf32> -> vector<16x16xf32>
    %48 = arith.addf %44, %45 : vector<16x16xf32>
    %49 = arith.addf %47, %44 : vector<16x16xf32>
    %50 = arith.subf %49, %45 : vector<16x16xf32>
    %c1 = arith.constant 1 : index
    %c0_31 = arith.constant 0 : index
    %c0_32 = arith.constant 0 : index
    %c0_33 = arith.constant 0 : index
    %51 = vector.load %arg2[%c1, %c0_31, %c0_32, %c0_33] : memref<2x2x16x16xf32, #tpu.memory_space<vmem>>, vector<1x2x16x16xf32>
    %52 = vector.shape_cast %51 : vector<1x2x16x16xf32> to vector<2x16x16xf32>
    %53 = vector.extract_strided_slice %52 {offsets = [0, 0, 0], sizes = [1, 16, 16], strides = [1, 1, 1]} : vector<2x16x16xf32> to vector<1x16x16xf32>
    %54 = vector.shape_cast %53 : vector<1x16x16xf32> to vector<16x16xf32>
    %55 = arith.subf %54, %48 : vector<16x16xf32>
    %56 = arith.mulf %5, %55 : vector<16x16xf32>
    %57 = arith.addf %48, %56 : vector<16x16xf32>
    %58 = vector.extract_strided_slice %52 {offsets = [1, 0, 0], sizes = [1, 16, 16], strides = [1, 1, 1]} : vector<2x16x16xf32> to vector<1x16x16xf32>
    %59 = vector.shape_cast %58 : vector<1x16x16xf32> to vector<16x16xf32>
    %60 = arith.subf %59, %50 : vector<16x16xf32>
    %61 = arith.mulf %5, %60 : vector<16x16xf32>
    %62 = arith.addf %50, %61 : vector<16x16xf32>
    %cst_34 = arith.constant dense<0.000000e+00> : vector<16x16xf32>
    %63 = tpu.matmul %2, %57, %cst_34 {dimension_numbers = #tpu.dot_dimension_numbers<[1], [0], [0], [1], [0, 0, 1, 1], [], []>} : vector<16x16xf32>, vector<16x16xf32>, vector<16x16xf32> -> vector<16x16xf32>
    %cst_35 = arith.constant dense<0.000000e+00> : vector<16x16xf32>
    %64 = tpu.matmul %3, %62, %cst_35 {dimension_numbers = #tpu.dot_dimension_numbers<[1], [0], [0], [1], [0, 0, 1, 1], [], []>} : vector<16x16xf32>, vector<16x16xf32>, vector<16x16xf32> -> vector<16x16xf32>
    %65 = arith.addf %57, %62 : vector<16x16xf32>
    %cst_36 = arith.constant dense<0.000000e+00> : vector<16x16xf32>
    %66 = tpu.matmul %4, %65, %cst_36 {dimension_numbers = #tpu.dot_dimension_numbers<[1], [0], [0], [1], [0, 0, 1, 1], [], []>} : vector<16x16xf32>, vector<16x16xf32>, vector<16x16xf32> -> vector<16x16xf32>
    %67 = arith.subf %63, %64 : vector<16x16xf32>
    %68 = arith.subf %66, %63 : vector<16x16xf32>
    %69 = arith.subf %68, %64 : vector<16x16xf32>
    %70 = tpu.concatenate %67, %69 in 1 : vector<16x16xf32>, vector<16x16xf32> -> vector<16x32xf32>
    %cst_37 = arith.constant dense<0.000000e+00> : vector<16x128xf32>
    %71 = tpu.matmul %70, %1, %cst_37 {dimension_numbers = #tpu.dot_dimension_numbers<[1], [0], [0], [1], [0, 0, 1, 1], [], []>} : vector<16x32xf32>, vector<32x128xf32>, vector<16x128xf32> -> vector<16x128xf32>
    %c1_38 = arith.constant 1 : index
    %c0_39 = arith.constant 0 : index
    %c0_40 = arith.constant 0 : index
    %72 = vector.load %arg9[%c1_38, %c0_39, %c0_40] : memref<2x16x128xf32, #tpu.memory_space<vmem>>, vector<1x16x128xf32>
    %73 = vector.shape_cast %72 : vector<1x16x128xf32> to vector<16x128xf32>
    %74 = vector.shape_cast %71 : vector<16x128xf32> to vector<1x16x128xf32>
    tpu.vector_store %arg9[%c1_38, %c0_39, %c0_40], %74 {strides = array<i32>} : memref<2x16x128xf32, #tpu.memory_space<vmem>>, vector<1x16x128xf32>,
    return
  }
  func.func @transform_0(%arg0: i32) -> (i32, i32, i32) {
    %c0_i32 = arith.constant 0 : i32
    %c0_i32_0 = arith.constant 0 : i32
    %c0_i32_1 = arith.constant 0 : i32
    return %arg0, %c0_i32, %c0_i32_0 : i32, i32, i32
  }
  func.func @transform_1(%arg0: i32) -> (i32, i32, i32, i32) {
    %c0_i32 = arith.constant 0 : i32
    %c0_i32_0 = arith.constant 0 : i32
    %c0_i32_1 = arith.constant 0 : i32
    %c0_i32_2 = arith.constant 0 : i32
    return %arg0, %c0_i32, %c0_i32_0, %c0_i32_1 : i32, i32, i32, i32
  }
  func.func @transform_2(%arg0: i32) -> (i32, i32) {
    %c0_i32 = arith.constant 0 : i32
    %c0_i32_0 = arith.constant 0 : i32
    %c0_i32_1 = arith.constant 0 : i32
    return %c0_i32, %c0_i32_0 : i32, i32
  }
  func.func @transform_3(%arg0: i32) -> (i32, i32) {
    %c0_i32 = arith.constant 0 : i32
    %c0_i32_0 = arith.constant 0 : i32
    %c0_i32_1 = arith.constant 0 : i32
    return %c0_i32, %c0_i32_0 : i32, i32
  }
  func.func @transform_4(%arg0: i32) -> (i32, i32) {
    %c0_i32 = arith.constant 0 : i32
    %c0_i32_0 = arith.constant 0 : i32
    %c0_i32_1 = arith.constant 0 : i32
    return %c0_i32, %c0_i32_0 : i32, i32
  }
  func.func @transform_5(%arg0: i32) -> (i32, i32) {
    %c0_i32 = arith.constant 0 : i32
    %c0_i32_0 = arith.constant 0 : i32
    %c0_i32_1 = arith.constant 0 : i32
    return %c0_i32, %c0_i32_0 : i32, i32
  }
  func.func @transform_6(%arg0: i32) -> (i32, i32) {
    %c0_i32 = arith.constant 0 : i32
    %c0_i32_0 = arith.constant 0 : i32
    %c0_i32_1 = arith.constant 0 : i32
    return %c0_i32, %c0_i32_0 : i32, i32
  }
  func.func @transform_7(%arg0: i32) -> (i32, i32) {
    %c0_i32 = arith.constant 0 : i32
    %c0_i32_0 = arith.constant 0 : i32
    %c0_i32_1 = arith.constant 0 : i32
    return %c0_i32, %c0_i32_0 : i32, i32
  }
  func.func @transform_8(%arg0: i32) -> (i32, i32, i32) {
    %c0_i32 = arith.constant 0 : i32
    %c0_i32_0 = arith.constant 0 : i32
    %c0_i32_1 = arith.constant 0 : i32
    return %arg0, %c0_i32, %c0_i32_0 : i32, i32, i32
  }
}

</mosaic_0001>

<llo_original>
// kernel: tpu_custom_call.1
$region0: #{tpu_custom_call.1}
  #allocation0 [shape = 'u32[]', space=smem, size = 0x4, offset = 0x4, fixed_abs, tag = 'smem constant byte address 0x4 - core index']
  #allocation1 [shape = 'u32[144,128]{1,0:T(1,128)}', space=vmem, size = 0x12000, scoped, tag = 'internal scratch']
  %s0 = inlined_call_operand.hbm [shape: f32[8,16,16], index: 0, kind: input, shape index: {}]
  %s1 = inlined_call_operand.hbm [shape: f32[8,2,16,16], index: 1, kind: input, shape index: {}]
  %s2 = inlined_call_operand.hbm [shape: f32[16,16], index: 2, kind: input, shape index: {}]
  %s3 = inlined_call_operand.hbm [shape: f32[16,32], index: 3, kind: input, shape index: {}]
  %s4 = inlined_call_operand.hbm [shape: f32[32,128], index: 4, kind: input, shape index: {}]
  %s5 = inlined_call_operand.vmem [shape: f32[16,16], index: 5, kind: input, shape index: {}]
  %s6 = inlined_call_operand.hbm [shape: f32[16,16], index: 6, kind: input, shape index: {}]
  %s7 = inlined_call_operand.hbm [shape: f32[16,16], index: 7, kind: input, shape index: {}]
  %s8 = inlined_call_operand.hbm [shape: f32[8,16,128], index: 8, kind: output, shape index: {}]
  %s9 = sld [smem:[#allocation0]]
  $region93: #{tpu_custom_call.1} parent=0
    _
  %s11 = ssub.s32 1, %s9
  %s12 = scalar_select 0, %s11, %s9
  $region1: #{tpu_custom_call.1} parent=0
    #allocation2 [shape = 'u8[32768]{0}', space=vmem, size = 0x8000, scoped, tag = 'input window, operand 0']
    #allocation3 [shape = 's32[2]{0}', space=sflag, size = 0x8, scoped, tag = 'scoped memory for tpu_custom_call.1']
    #allocation4 [shape = 's32[2]{0}', space=sflag, size = 0x8, scoped, tag = 'scoped memory for tpu_custom_call.1']
    #allocation5 [shape = 'u8[65536]{0}', space=vmem, size = 0x10000, scoped, tag = 'input window, operand 1']
    #allocation6 [shape = 's32[2]{0}', space=sflag, size = 0x8, scoped, tag = 'scoped memory for tpu_custom_call.1']
    #allocation7 [shape = 'u8[8192]{0}', space=vmem, size = 0x2000, scoped, tag = 'input window, operand 2, single buffered']
    #allocation8 [shape = 'u8[8192]{0}', space=vmem, size = 0x2000, scoped, tag = 'input window, operand 3, single buffered']
    #allocation9 [shape = 's32[1]{0}', space=sflag, size = 0x4, scoped, tag = 'scoped memory for tpu_custom_call.1']
    #allocation10 [shape = 'u8[16384]{0}', space=vmem, size = 0x4000, scoped, tag = 'input window, operand 4, single buffered']
    #allocation11 [shape = 'u8[8192]{0}', space=vmem, size = 0x2000, scoped, tag = 'input window, operand 6, single buffered']
    #allocation12 [shape = 's32[1]{0}', space=sflag, size = 0x4, scoped, tag = 'scoped memory for tpu_custom_call.1']
    #allocation13 [shape = 'u8[8192]{0}', space=vmem, size = 0x2000, scoped, tag = 'input window, operand 7, single buffered']
    #allocation14 [shape = 'u8[32768]{0}', space=vmem, size = 0x8000, scoped, tag = 'output window, operand 0']
    %13 = vsyncpa [#allocation3], 0
    %s14 = scalar_lea.sflag [#allocation3], 1
    %15 = vsyncpa %s14, 0
    %16 = vsyncpa [#allocation6], 0
    %s17 = scalar_lea.sflag [#allocation6], 1
    %18 = vsyncpa %s17, 0
    %19 = vsyncpa [#allocation9], 0
    %20 = vsyncpa [#allocation12], 0
    %21 = vsyncpa [#allocation4], 0
    %s22 = scalar_lea.sflag [#allocation4], 1
    %23 = vsyncpa %s22, 0
    loop: start=0, step=1, limit=6
    $region2: #{tpu_custom_call.1} parent=1 // loop_pre_header
      _
    $region3: #{tpu_custom_call.1} parent=1 // loop_header
      %s25 = sphi 0, %s29
      %p26 = scmp.ge.s32.totalorder %s25, 6
      %s35 = sphi 0, %s37
      %s38 = sphi 0, %s35
      %s39 = sphi 0, %s38
      %s55 = sphi 0, %s39
      %s61 = sphi 0, %s63
      %s64 = sphi 0, %s61
      %s65 = sphi 0, %s64
      %s81 = sphi 0, %s65
      %s85 = sphi 0, %s85
      %s87 = sphi 0, %s85
      %s88 = sphi 0, %s87
      %s102 = sphi 0, %s88
      %s106 = sphi 0, %s106
      %s108 = sphi 0, %s106
      %s109 = sphi 0, %s108
      %s123 = sphi 0, %s109
      %s127 = sphi 0, %s127
      %s129 = sphi 0, %s127
      %s130 = sphi 0, %s129
      %s144 = sphi 0, %s130
      %s148 = sphi 0, %s148
      %s150 = sphi 0, %s148
      %s151 = sphi 0, %s150
      %s165 = sphi 0, %s151
      %s169 = sphi 0, %s169
      %s171 = sphi 0, %s169
      %s172 = sphi 0, %s171
      %s186 = sphi 0, %s172
      %s190 = sphi 0, %s190
      %s192 = sphi 0, %s190
      %s193 = sphi 0, %s192
      %s207 = sphi 0, %s193
      %s213 = sphi 0, %s215
      %s216 = sphi 0, %s213
      %s217 = sphi 0, %s216
      %s233 = sphi 0, %s217
    $region4: #{tpu_custom_call.1} parent=1 // loop_header_branch
      %28 = sbr.rel (%p26) target = $region8
    $region5: #{tpu_custom_call.1} parent=1 // loop_body
      %s30 = ssub.s32 %s25, 1
      %s31 = ssub.s32 %s25, 2
      %s32 = sadd.s32 %s25, 1
      %s33 = ssub.s32 %s25, %s32
      %p34 = scmp.eq.s32.totalorder %s33, 0
      %s36 = sadd.s32 %s35, 1
      %s37 = scalar_select %p34, %s35, %s36
      %p40 = pneg %p34
      %p41 = scmp.eq.s32.totalorder %s25, 3
      %p42 = por %p40, %p41
      %p43 = scmp.ne.s32.totalorder %s35, %s38
      %p44 = scmp.eq.s32.totalorder %s25, 0
      %p45 = por %p43, %p44
      %p46 = scmp.ne.s32.totalorder %s35, %s38
      %p47 = scmp.eq.s32.totalorder %s30, 3
      %p48 = por %p46, %p47
      %p49 = scmp.ne.s32.totalorder %s38, %s39
      %p50 = scmp.eq.s32.totalorder %s30, 0
      %p51 = por %p49, %p50
      %p52 = scmp.ne.s32.totalorder %s38, %s39
      %p53 = scmp.eq.s32.totalorder %s31, 3
      %p54 = por %p52, %p53
      %p56 = scmp.ne.s32.totalorder %s39, %s55
      %p57 = scmp.eq.s32.totalorder %s31, 0
      %p58 = por %p56, %p57
      %s59 = ssub.s32 %s25, %s32
      %p60 = scmp.eq.s32.totalorder %s59, 0
      %s62 = sadd.s32 %s61, 1
      %s63 = scalar_select %p60, %s61, %s62
      %p66 = pneg %p60
      %p67 = scmp.eq.s32.totalorder %s25, 3
      %p68 = por %p66, %p67
      %p69 = scmp.ne.s32.totalorder %s61, %s64
      %p70 = scmp.eq.s32.totalorder %s25, 0
      %p71 = por %p69, %p70
      %p72 = scmp.ne.s32.totalorder %s61, %s64
      %p73 = scmp.eq.s32.totalorder %s30, 3
      %p74 = por %p72, %p73
      %p75 = scmp.ne.s32.totalorder %s64, %s65
      %p76 = scmp.eq.s32.totalorder %s30, 0
      %p77 = por %p75, %p76
      %p78 = scmp.ne.s32.totalorder %s64, %s65
      %p79 = scmp.eq.s32.totalorder %s31, 3
      %p80 = por %p78, %p79
      %p82 = scmp.ne.s32.totalorder %s65, %s81
      %p83 = scmp.eq.s32.totalorder %s31, 0
      %p84 = por %p82, %p83
      %s86 = sadd.s32 %s85, 1
      %p89 = scmp.eq.s32.totalorder %s25, 3
      %p90 = scmp.ne.s32.totalorder %s85, %s87
      %p91 = scmp.eq.s32.totalorder %s25, 0
      %p92 = por %p90, %p91
      %p93 = scmp.ne.s32.totalorder %s85, %s87
      %p94 = scmp.eq.s32.totalorder %s30, 3
      %p95 = por %p93, %p94
      %p96 = scmp.ne.s32.totalorder %s87, %s88
      %p97 = scmp.eq.s32.totalorder %s30, 0
      %p98 = por %p96, %p97
      %p99 = scmp.ne.s32.totalorder %s87, %s88
      %p100 = scmp.eq.s32.totalorder %s31, 3
      %p101 = por %p99, %p100
      %p103 = scmp.ne.s32.totalorder %s88, %s102
      %p104 = scmp.eq.s32.totalorder %s31, 0
      %p105 = por %p103, %p104
      %s107 = sadd.s32 %s106, 1
      %p110 = scmp.eq.s32.totalorder %s25, 3
      %p111 = scmp.ne.s32.totalorder %s106, %s108
      %p112 = scmp.eq.s32.totalorder %s25, 0
      %p113 = por %p111, %p112
      %p114 = scmp.ne.s32.totalorder %s106, %s108
      %p115 = scmp.eq.s32.totalorder %s30, 3
      %p116 = por %p114, %p115
      %p117 = scmp.ne.s32.totalorder %s108, %s109
      %p118 = scmp.eq.s32.totalorder %s30, 0
      %p119 = por %p117, %p118
      %p120 = scmp.ne.s32.totalorder %s108, %s109
      %p121 = scmp.eq.s32.totalorder %s31, 3
      %p122 = por %p120, %p121
      %p124 = scmp.ne.s32.totalorder %s109, %s123
      %p125 = scmp.eq.s32.totalorder %s31, 0
      %p126 = por %p124, %p125
      %s128 = sadd.s32 %s127, 1
      %p131 = scmp.eq.s32.totalorder %s25, 3
      %p132 = scmp.ne.s32.totalorder %s127, %s129
      %p133 = scmp.eq.s32.totalorder %s25, 0
      %p134 = por %p132, %p133
      %p135 = scmp.ne.s32.totalorder %s127, %s129
      %p136 = scmp.eq.s32.totalorder %s30, 3
      %p137 = por %p135, %p136
      %p138 = scmp.ne.s32.totalorder %s129, %s130
      %p139 = scmp.eq.s32.totalorder %s30, 0
      %p140 = por %p138, %p139
      %p141 = scmp.ne.s32.totalorder %s129, %s130
      %p142 = scmp.eq.s32.totalorder %s31, 3
      %p143 = por %p141, %p142
      %p145 = scmp.ne.s32.totalorder %s130, %s144
      %p146 = scmp.eq.s32.totalorder %s31, 0
      %p147 = por %p145, %p146
      %s149 = sadd.s32 %s148, 1
      %p152 = scmp.eq.s32.totalorder %s25, 3
      %p153 = scmp.ne.s32.totalorder %s148, %s150
      %p154 = scmp.eq.s32.totalorder %s25, 0
      %p155 = por %p153, %p154
      %p156 = scmp.ne.s32.totalorder %s148, %s150
      %p157 = scmp.eq.s32.totalorder %s30, 3
      %p158 = por %p156, %p157
      %p159 = scmp.ne.s32.totalorder %s150, %s151
      %p160 = scmp.eq.s32.totalorder %s30, 0
      %p161 = por %p159, %p160
      %p162 = scmp.ne.s32.totalorder %s150, %s151
      %p163 = scmp.eq.s32.totalorder %s31, 3
      %p164 = por %p162, %p163
      %p166 = scmp.ne.s32.totalorder %s151, %s165
      %p167 = scmp.eq.s32.totalorder %s31, 0
      %p168 = por %p166, %p167
      %s170 = sadd.s32 %s169, 1
      %p173 = scmp.eq.s32.totalorder %s25, 3
      %p174 = scmp.ne.s32.totalorder %s169, %s171
      %p175 = scmp.eq.s32.totalorder %s25, 0
      %p176 = por %p174, %p175
      %p177 = scmp.ne.s32.totalorder %s169, %s171
      %p178 = scmp.eq.s32.totalorder %s30, 3
      %p179 = por %p177, %p178
      %p180 = scmp.ne.s32.totalorder %s171, %s172
      %p181 = scmp.eq.s32.totalorder %s30, 0
      %p182 = por %p180, %p181
      %p183 = scmp.ne.s32.totalorder %s171, %s172
      %p184 = scmp.eq.s32.totalorder %s31, 3
      %p185 = por %p183, %p184
      %p187 = scmp.ne.s32.totalorder %s172, %s186
      %p188 = scmp.eq.s32.totalorder %s31, 0
      %p189 = por %p187, %p188
      %s191 = sadd.s32 %s190, 1
      %p194 = scmp.eq.s32.totalorder %s25, 3
      %p195 = scmp.ne.s32.totalorder %s190, %s192
      %p196 = scmp.eq.s32.totalorder %s25, 0
      %p197 = por %p195, %p196
      %p198 = scmp.ne.s32.totalorder %s190, %s192
      %p199 = scmp.eq.s32.totalorder %s30, 3
      %p200 = por %p198, %p199
      %p201 = scmp.ne.s32.totalorder %s192, %s193
      %p202 = scmp.eq.s32.totalorder %s30, 0
      %p203 = por %p201, %p202
      %p204 = scmp.ne.s32.totalorder %s192, %s193
      %p205 = scmp.eq.s32.totalorder %s31, 3
      %p206 = por %p204, %p205
      %p208 = scmp.ne.s32.totalorder %s193, %s207
      %p209 = scmp.eq.s32.totalorder %s31, 0
      %p210 = por %p208, %p209
      %s211 = ssub.s32 %s25, %s32
      %p212 = scmp.eq.s32.totalorder %s211, 0
      %s214 = sadd.s32 %s213, 1
      %s215 = scalar_select %p212, %s213, %s214
      %p218 = pneg %p212
      %p219 = scmp.eq.s32.totalorder %s25, 3
      %p220 = por %p218, %p219
      %p221 = scmp.ne.s32.totalorder %s213, %s216
      %p222 = scmp.eq.s32.totalorder %s25, 0
      %p223 = por %p221, %p222
      %p224 = scmp.ne.s32.totalorder %s213, %s216
      %p225 = scmp.eq.s32.totalorder %s30, 3
      %p226 = por %p224, %p225
      %p227 = scmp.ne.s32.totalorder %s216, %s217
      %p228 = scmp.eq.s32.totalorder %s30, 0
      %p229 = por %p227, %p228
      %p230 = scmp.ne.s32.totalorder %s216, %s217
      %p231 = scmp.eq.s32.totalorder %s31, 3
      %p232 = por %p230, %p231
      %p234 = scmp.ne.s32.totalorder %s217, %s233
      %p235 = scmp.eq.s32.totalorder %s31, 0
      %p236 = por %p234, %p235
      %p237 = scmp.le.s32.totalorder 1, %s25
      %p238 = scmp.lt.s32.totalorder %s25, 5
      %p239 = pnand %p237, %p238
      %p240 = pneg %p239
      // Predicated region
      $region9: #{tpu_custom_call.1} parent=5 // pred_check
        _
      $region10: #{tpu_custom_call.1} parent=5 // pred_check_branch
        %242 = sbr.rel (%p239) target = $region12
      $region11: #{tpu_custom_call.1} parent=5 // pred_region
        %s243 = ssub.s32 %s25, 1
        // Predicated region
        $region13: #{tpu_custom_call.1} parent=11 // pred_check
          %p244 = pneg %p98
        $region14: #{tpu_custom_call.1} parent=11 // pred_check_branch
          %246 = sbr.rel (%p244) target = $region16
        $region15: #{tpu_custom_call.1} parent=11 // pred_region
          %s248 = ssub.s32 256, 256
          %249 = vsyncadd [#allocation6], %s248
          %s250 = sshll.u32 [#allocation7], 4
          %s251 = int_to_ptr.vmem [resolvable:$true] %s250
          %256 = dma.hbm_to_vmem [thread:$0]  %s2, 256, %s251, [#allocation6], 128, 128, 8
        $region16: #{tpu_custom_call.1} parent=11 // pred_fallthru
          _
        // Predicated region
        $region17: #{tpu_custom_call.1} parent=11 // pred_check
          %p257 = pneg %p119
        $region18: #{tpu_custom_call.1} parent=11 // pred_check_branch
          %259 = sbr.rel (%p257) target = $region20
        $region19: #{tpu_custom_call.1} parent=11 // pred_region
          %s261 = ssub.s32 256, 256
          %262 = vsyncadd [#allocation9], %s261
          %s263 = sshll.u32 [#allocation8], 4
          %s264 = int_to_ptr.vmem [resolvable:$true] %s263
          %269 = dma.hbm_to_vmem [thread:$0]  %s3, 256, %s264, [#allocation9], 128, 128, 8
        $region20: #{tpu_custom_call.1} parent=11 // pred_fallthru
          _
        // Predicated region
        $region21: #{tpu_custom_call.1} parent=11 // pred_check
          %p270 = pneg %p140
        $region22: #{tpu_custom_call.1} parent=11 // pred_check_branch
          %272 = sbr.rel (%p270) target = $region24
        $region23: #{tpu_custom_call.1} parent=11 // pred_region
          %s274 = ssub.s32 512, 512
          %275 = vsyncadd [#allocation9], %s274
          %s276 = sshll.u32 [#allocation10], 4
          %s277 = int_to_ptr.vmem [resolvable:$true] %s276
          %282 = dma.hbm_to_vmem [thread:$0]  %s4, 512, %s277, [#allocation9], 128, 128, 8
        $region24: #{tpu_custom_call.1} parent=11 // pred_fallthru
          _
        // Predicated region
        $region25: #{tpu_custom_call.1} parent=11 // pred_check
          %p283 = pneg %p161
        $region26: #{tpu_custom_call.1} parent=11 // pred_check_branch
          %285 = sbr.rel (%p283) target = $region28
        $region27: #{tpu_custom_call.1} parent=11 // pred_region
          _
        $region28: #{tpu_custom_call.1} parent=11 // pred_fallthru
          _
        // Predicated region
        $region29: #{tpu_custom_call.1} parent=11 // pred_check
          %p286 = pneg %p182
        $region30: #{tpu_custom_call.1} parent=11 // pred_check_branch
          %288 = sbr.rel (%p286) target = $region32
        $region31: #{tpu_custom_call.1} parent=11 // pred_region
          %s290 = ssub.s32 256, 256
          %291 = vsyncadd [#allocation12], %s290
          %s292 = sshll.u32 [#allocation11], 4
          %s293 = int_to_ptr.vmem [resolvable:$true] %s292
          %298 = dma.hbm_to_vmem [thread:$0]  %s6, 256, %s293, [#allocation12], 128, 128, 8
        $region32: #{tpu_custom_call.1} parent=11 // pred_fallthru
          _
        // Predicated region
        $region33: #{tpu_custom_call.1} parent=11 // pred_check
          %p299 = pneg %p203
        $region34: #{tpu_custom_call.1} parent=11 // pred_check_branch
          %301 = sbr.rel (%p299) target = $region36
        $region35: #{tpu_custom_call.1} parent=11 // pred_region
          %s303 = ssub.s32 256, 256
          %304 = vsyncadd [#allocation12], %s303
          %s305 = sshll.u32 [#allocation13], 4
          %s306 = int_to_ptr.vmem [resolvable:$true] %s305
          %311 = dma.hbm_to_vmem [thread:$0]  %s7, 256, %s306, [#allocation12], 128, 128, 8
        $region36: #{tpu_custom_call.1} parent=11 // pred_fallthru
          _
      $region12: #{tpu_custom_call.1} parent=5 // pred_fallthru
        _
      %p312 = scmp.lt.s32.totalorder %s25, 4
      // Predicated region
      $region37: #{tpu_custom_call.1} parent=5 // pred_check
        %p313 = pneg %p312
      $region38: #{tpu_custom_call.1} parent=5 // pred_check_branch
        %315 = sbr.rel (%p313) target = $region40
      $region39: #{tpu_custom_call.1} parent=5 // pred_region
        // Predicated region
        $region41: #{tpu_custom_call.1} parent=39 // pred_check
          %p316 = pneg %p45
        $region42: #{tpu_custom_call.1} parent=39 // pred_check_branch
          %318 = sbr.rel (%p316) target = $region44
        $region43: #{tpu_custom_call.1} parent=39 // pred_region
          %s319 = sand.u32 %s35, 1
          %s320 = scalar_lea.sflag [#allocation3], %s319
          %s321 = sand.u32 %s35, 1
          %s322 = smul.addr %s321, 32
          %s323 = scalar_lea.vmem [#allocation2], %s322
          %s324 = smul.u32 2, %s25
          %s326 = ssub.s32 512, 512
          %327 = vsyncadd %s320, %s326
          %s328 = smul.addr %s324, 2
          %s329 = smul.addr %s328, 128
          %s330 = scalar_lea.hbm %s0, %s329
          %s331 = sshll.u32 %s323, 4
          %s332 = int_to_ptr.vmem [resolvable:$true] %s331
          %337 = dma.hbm_to_vmem [thread:$0]  %s330, 512, %s332, %s320, 128, 128, 8
        $region44: #{tpu_custom_call.1} parent=39 // pred_fallthru
          _
        // Predicated region
        $region45: #{tpu_custom_call.1} parent=39 // pred_check
          %p338 = pneg %p71
        $region46: #{tpu_custom_call.1} parent=39 // pred_check_branch
          %340 = sbr.rel (%p338) target = $region48
        $region47: #{tpu_custom_call.1} parent=39 // pred_region
          %s341 = sand.u32 %s25, 1
          %s342 = scalar_lea.sflag [#allocation6], %s341
          %s343 = sand.u32 %s61, 1
          %s344 = smul.addr %s343, 64
          %s345 = scalar_lea.vmem [#allocation5], %s344
          %s346 = smul.u32 2, %s25
          %s348 = ssub.s32 1024, 1024
          %349 = vsyncadd %s342, %s348
          %s350 = smul.addr %s346, 4
          %s351 = smul.addr %s350, 128
          %s352 = scalar_lea.hbm %s1, %s351
          %s353 = sshll.u32 %s345, 4
          %s354 = int_to_ptr.vmem [resolvable:$true] %s353
          %359 = dma.hbm_to_vmem [thread:$0]  %s352, 1024, %s354, %s342, 128, 128, 8
        $region48: #{tpu_custom_call.1} parent=39 // pred_fallthru
          _
      $region40: #{tpu_custom_call.1} parent=5 // pred_fallthru
        _
      %p360 = scmp.le.s32.totalorder 1, %s25
      %p361 = scmp.lt.s32.totalorder %s25, 5
      %p362 = pnand %p360, %p361
      %p363 = pneg %p362
      // Predicated region
      $region49: #{tpu_custom_call.1} parent=5 // pred_check
        _
      $region50: #{tpu_custom_call.1} parent=5 // pred_check_branch
        %365 = sbr.rel (%p362) target = $region52
      $region51: #{tpu_custom_call.1} parent=5 // pred_region
        %s366 = ssub.s32 %s25, 1
        %s367 = sand.u32 %s38, 1
        %s368 = scalar_lea.sflag [#allocation3], %s367
        %s369 = sand.u32 %s38, 1
        %s370 = smul.addr %s369, 32
        %s371 = scalar_lea.vmem [#allocation2], %s370
        // Predicated region
        $region53: #{tpu_custom_call.1} parent=51 // pred_check
          %p372 = pneg %p51
        $region54: #{tpu_custom_call.1} parent=51 // pred_check_branch
          %374 = sbr.rel (%p372) target = $region56
        $region55: #{tpu_custom_call.1} parent=51 // pred_region
          %375 = dma.done %s368, 512
        $region56: #{tpu_custom_call.1} parent=51 // pred_fallthru
          _
        %s376 = sand.u32 %s30, 1
        %s377 = scalar_lea.sflag [#allocation6], %s376
        %s378 = sand.u32 %s64, 1
        %s379 = smul.addr %s378, 64
        %s380 = scalar_lea.vmem [#allocation5], %s379
        // Predicated region
        $region57: #{tpu_custom_call.1} parent=51 // pred_check
          %p381 = pneg %p77
        $region58: #{tpu_custom_call.1} parent=51 // pred_check_branch
          %383 = sbr.rel (%p381) target = $region60
        $region59: #{tpu_custom_call.1} parent=51 // pred_region
          %384 = dma.done %s377, 1024
        $region60: #{tpu_custom_call.1} parent=51 // pred_fallthru
          _
        // Predicated region
        $region61: #{tpu_custom_call.1} parent=51 // pred_check
          %p385 = pneg %p98
        $region62: #{tpu_custom_call.1} parent=51 // pred_check_branch
          %387 = sbr.rel (%p385) target = $region64
        $region63: #{tpu_custom_call.1} parent=51 // pred_region
          %388 = dma.done [#allocation6], 256
        $region64: #{tpu_custom_call.1} parent=51 // pred_fallthru
          _
        // Predicated region
        $region65: #{tpu_custom_call.1} parent=51 // pred_check
          %p389 = pneg %p119
        $region66: #{tpu_custom_call.1} parent=51 // pred_check_branch
          %391 = sbr.rel (%p389) target = $region68
        $region67: #{tpu_custom_call.1} parent=51 // pred_region
          %392 = dma.done [#allocation9], 256
        $region68: #{tpu_custom_call.1} parent=51 // pred_fallthru
          _
        // Predicated region
        $region69: #{tpu_custom_call.1} parent=51 // pred_check
          %p393 = pneg %p140
        $region70: #{tpu_custom_call.1} parent=51 // pred_check_branch
          %395 = sbr.rel (%p393) target = $region72
        $region71: #{tpu_custom_call.1} parent=51 // pred_region
          %396 = dma.done [#allocation9], 512
        $region72: #{tpu_custom_call.1} parent=51 // pred_fallthru
          _
        // Predicated region
        $region73: #{tpu_custom_call.1} parent=51 // pred_check
          %p397 = pneg %p182
        $region74: #{tpu_custom_call.1} parent=51 // pred_check_branch
          %399 = sbr.rel (%p397) target = $region76
        $region75: #{tpu_custom_call.1} parent=51 // pred_region
          %400 = dma.done [#allocation12], 256
        $region76: #{tpu_custom_call.1} parent=51 // pred_fallthru
          _
        // Predicated region
        $region77: #{tpu_custom_call.1} parent=51 // pred_check
          %p401 = pneg %p203
        $region78: #{tpu_custom_call.1} parent=51 // pred_check_branch
          %403 = sbr.rel (%p401) target = $region80
        $region79: #{tpu_custom_call.1} parent=51 // pred_region
          %404 = dma.done [#allocation12], 256
        $region80: #{tpu_custom_call.1} parent=51 // pred_fallthru
          _
        %s405 = sand.u32 %s38, 1
        %s406 = scalar_lea.sflag [#allocation3], %s405
        %s407 = sand.u32 %s38, 1
        %s408 = smul.addr %s407, 32
        %s409 = scalar_lea.vmem [#allocation2], %s408
        %p410 = pneg %p51
        %p411 = pneg %p48
        %s412 = sand.u32 %s30, 1
        %s413 = scalar_lea.sflag [#allocation6], %s412
        %s414 = sand.u32 %s64, 1
        %s415 = smul.addr %s414, 64
        %s416 = scalar_lea.vmem [#allocation5], %s415
        %p417 = pneg %p77
        %p418 = pneg %p74
        %p419 = pneg %p98
        %p420 = pneg %p95
        %p421 = pneg %p119
        %p422 = pneg %p116
        %p423 = pneg %p140
        %p424 = pneg %p137
        %p425 = pneg %p161
        %p426 = pneg %p158
        %p427 = pneg %p182
        %p428 = pneg %p179
        %p429 = pneg %p203
        %p430 = pneg %p200
        %p431 = pneg %p229
        %p432 = pneg %p226
        %s433 = sand.u32 %s216, 1
        %s434 = scalar_lea.sflag [#allocation4], %s433
        %s435 = sand.u32 %s216, 1
        %s436 = smul.addr %s435, 32
        %s437 = scalar_lea.vmem [#allocation14], %s436
        %s438 = smul.u32 2, %s30
        %s439 = smul.u32 2, %s30
        %s440 = smul.u32 2, %s30
        %v441 = vld [vmem:[#allocation8] sm:$0xff]
        %v442 = vld [vmem:[#allocation8 + $0x8] sm:$0xff]
        %v443 = vld [vmem:[#allocation10] sm:$0xff]
        %v444 = vld [vmem:[#allocation10 + $0x8] sm:$0xff]
        %v445 = vld [vmem:[#allocation10 + $0x10] sm:$0xff]
        %v446 = vld [vmem:[#allocation10 + $0x18] sm:$0xff]
        %v447 = vld [vmem:[%s5] sm:$0xff]
        %v448 = vld [vmem:[%s5 + $0x8] sm:$0xff]
        %v449 = vld [vmem:[#allocation11] sm:$0xff]
        %v450 = vld [vmem:[#allocation11 + $0x8] sm:$0xff]
        %v451 = vld [vmem:[#allocation13] sm:$0xff]
        %v452 = vld [vmem:[#allocation13 + $0x8] sm:$0xff]
        %v453 = vld [vmem:[#allocation7] sm:$0xff]
        %v454 = vld [vmem:[#allocation7 + $0x8] sm:$0xff]
        %v455 = vld [vmem:[%s371] sm:$0xff]
        %v456 = vld [vmem:[%s371 + $0x8] sm:$0xff]
        %v457 = vld [vmem:[%s371 + $0x10] sm:$0xff]
        %v458 = vld [vmem:[%s371 + $0x18] sm:$0xff]
        %vm459 = vcmask 130048
        %v461 = vsel %vm459, %v455, 0
        %v464 = vsel %vm459, %v456, 0
        %v467 = vsel %vm459, %v457, 0
        %v470 = vsel %vm459, %v458, 0
        %472 = vmatprep.subr.mxu0 0.0
        %473 = vmatpush1.msra.mxu0 %v441
        %474 = vmatprep.subr.mxu0 0.0
        %475 = vmatpush1.msra.mxu0 %v442
        %476 = vmatprep.subr.mxu0 0.0
        %477 = vmatpush1.msra.mxu0 0.0
        %478 = vmatprep.subr.mxu0 0.0
        %479 = vmatpush1.msra.mxu0 0.0
        %480 = vmatprep.subr.mxu0 0.0
        %481 = vmatpush1.msra.mxu0 0.0
        %482 = vmatprep.subr.mxu0 0.0
        %483 = vmatpush1.msra.mxu0 0.0
        %484 = vmatprep.subr.mxu0 0.0
        %485 = vmatpush1.msra.mxu0 0.0
        %486 = vmatprep.subr.mxu0 0.0
        %487 = vmatpush1.msra.mxu0 0.0
        %488 = vmatprep.subr.mxu0 0.0
        %489 = vmatpush1.msra.mxu0 0.0
        %490 = vmatprep.subr.mxu0 0.0
        %491 = vmatpush1.msra.mxu0 0.0
        %492 = vmatprep.subr.mxu0 0.0
        %493 = vmatpush1.msra.mxu0 0.0
        %494 = vmatprep.subr.mxu0 0.0
        %495 = vmatpush1.msra.mxu0 0.0
        %496 = vmatprep.subr.mxu0 0.0
        %497 = vmatpush1.msra.mxu0 0.0
        %498 = vmatprep.subr.mxu0 0.0
        %499 = vmatpush1.msra.mxu0 0.0
        %500 = vmatprep.subr.mxu0 0.0
        %501 = vmatpush1.msra.mxu0 0.0
        %502 = vmatprep.subr.mxu0 0.0
        %503 = vmatpush1.msra.mxu0 0.0
        %504 = vmatprep.subr.mxu0 0.0
        %505 = vmatpush1.msra.mxu0 0.0
        %506 = vmatprep.subr.mxu0 0.0
        %507 = vmatpush1.msra.mxu0 0.0
        %508 = vmatprep.subr.mxu0 0.0
        %509 = vmatpush1.msra.mxu0 0.0
        %510 = vmatprep.subr.mxu0 0.0
        %511 = vmatpush1.msra.mxu0 0.0
        %512 = vmatprep.subr.mxu0 0.0
        %513 = vmatpush1.msra.mxu0 0.0
        %514 = vmatprep.subr.mxu0 0.0
        %515 = vmatpush1.msra.mxu0 0.0
        %516 = vmatprep.subr.mxu0 0.0
        %517 = vmatpush1.msra.mxu0 0.0
        %518 = vmatprep.subr.mxu0 0.0
        %519 = vmatpush1.msra.mxu0 0.0
        %520 = vmatprep.subr.mxu0 0.0
        %521 = vmatpush1.msra.mxu0 0.0
        %522 = vmatprep.subr.mxu0 0.0
        %523 = vmatpush1.msra.mxu0 0.0
        %524 = vmatprep.subr.mxu0 0.0
        %525 = vmatpush1.msra.mxu0 0.0
        %526 = vmatprep.subr.mxu0 0.0
        %527 = vmatpush1.msra.mxu0 0.0
        %528 = vmatprep.subr.mxu0 0.0
        %529 = vmatpush1.msra.mxu0 0.0
        %530 = vmatprep.subr.mxu0 0.0
        %531 = vmatpush1.msra.mxu0 0.0
        %532 = vmatprep.subr.mxu0 0.0
        %533 = vmatpush1.msra.mxu0 0.0
        %534 = vmatprep.subr.mxu0 0.0
        %535 = vmatpush1.msra.mxu0 0.0
        %536 = vmatprep.mubr.f32.mxu0 0.0
        %537 = vmatmul.mubr.f32.gmra.mrb[0].mxu0 %v461
        %v538 = vpop.f32.mrb[0].mxu0
        %v539 = vadd.f32 0.0, %v538
        %v540 = vpop.f32.mrb[0].mxu0
        %541 = vmatprep.mubr.f32.mxu0 0.0
        %542 = vmatmul.mubr.f32.gmra.mrb[0].mxu0 %v464
        %v543 = vpop.f32.mrb[0].mxu0
        %v544 = vadd.f32 0.0, %v543
        %v545 = vpop.f32.mrb[0].mxu0
        %546 = vmatprep.mubr.f32.mxu0 0.0
        %547 = vmatmul.mubr.f32.gmra.mrb[0].mxu0 %v467
        %v548 = vpop.f32.mrb[0].mxu0
        %v549 = vadd.f32 0.0, %v548
        %v550 = vpop.f32.mrb[0].mxu0
        %551 = vmatprep.mubr.f32.mxu0 0.0
        %552 = vmatmul.mubr.f32.gmra.mrb[0].mxu0 %v470
        %v553 = vpop.f32.mrb[0].mxu0
        %v554 = vadd.f32 0.0, %v553
        %v555 = vpop.f32.mrb[0].mxu0
        %556 = vdwg.mxu0
        %v558 = vsel %vm459, %v447, 0
        %v561 = vsel %vm459, %v448, 0
        %563 = vmatprep.subr.mxu0 0.0
        %564 = vmatpush1.msra.mxu0 %v539
        %565 = vmatprep.subr.mxu0 0.0
        %566 = vmatpush1.msra.mxu0 %v544
        %567 = vmatprep.subr.mxu0 0.0
        %568 = vmatpush1.msra.mxu0 0.0
        %569 = vmatprep.subr.mxu0 0.0
        %570 = vmatpush1.msra.mxu0 0.0
        %571 = vmatprep.subr.mxu0 0.0
        %572 = vmatpush1.msra.mxu0 0.0
        %573 = vmatprep.subr.mxu0 0.0
        %574 = vmatpush1.msra.mxu0 0.0
        %575 = vmatprep.subr.mxu0 0.0
        %576 = vmatpush1.msra.mxu0 0.0
        %577 = vmatprep.subr.mxu0 0.0
        %578 = vmatpush1.msra.mxu0 0.0
        %579 = vmatprep.subr.mxu0 0.0
        %580 = vmatpush1.msra.mxu0 0.0
        %581 = vmatprep.subr.mxu0 0.0
        %582 = vmatpush1.msra.mxu0 0.0
        %583 = vmatprep.subr.mxu0 0.0
        %584 = vmatpush1.msra.mxu0 0.0
        %585 = vmatprep.subr.mxu0 0.0
        %586 = vmatpush1.msra.mxu0 0.0
        %587 = vmatprep.subr.mxu0 0.0
        %588 = vmatpush1.msra.mxu0 0.0
        %589 = vmatprep.subr.mxu0 0.0
        %590 = vmatpush1.msra.mxu0 0.0
        %591 = vmatprep.subr.mxu0 0.0
        %592 = vmatpush1.msra.mxu0 0.0
        %593 = vmatprep.subr.mxu0 0.0
        %594 = vmatpush1.msra.mxu0 0.0
        %595 = vmatprep.subr.mxu0 0.0
        %596 = vmatpush1.msra.mxu0 0.0
        %597 = vmatprep.subr.mxu0 0.0
        %598 = vmatpush1.msra.mxu0 0.0
        %599 = vmatprep.subr.mxu0 0.0
        %600 = vmatpush1.msra.mxu0 0.0
        %601 = vmatprep.subr.mxu0 0.0
        %602 = vmatpush1.msra.mxu0 0.0
        %603 = vmatprep.subr.mxu0 0.0
        %604 = vmatpush1.msra.mxu0 0.0
        %605 = vmatprep.subr.mxu0 0.0
        %606 = vmatpush1.msra.mxu0 0.0
        %607 = vmatprep.subr.mxu0 0.0
        %608 = vmatpush1.msra.mxu0 0.0
        %609 = vmatprep.subr.mxu0 0.0
        %610 = vmatpush1.msra.mxu0 0.0
        %611 = vmatprep.subr.mxu0 0.0
        %612 = vmatpush1.msra.mxu0 0.0
        %613 = vmatprep.subr.mxu0 0.0
        %614 = vmatpush1.msra.mxu0 0.0
        %615 = vmatprep.subr.mxu0 0.0
        %616 = vmatpush1.msra.mxu0 0.0
        %617 = vmatprep.subr.mxu0 0.0
        %618 = vmatpush1.msra.mxu0 0.0
        %619 = vmatprep.subr.mxu0 0.0
        %620 = vmatpush1.msra.mxu0 0.0
        %621 = vmatprep.subr.mxu0 0.0
        %622 = vmatpush1.msra.mxu0 0.0
        %623 = vmatprep.subr.mxu0 0.0
        %624 = vmatpush1.msra.mxu0 0.0
        %625 = vmatprep.subr.mxu0 0.0
        %626 = vmatpush1.msra.mxu0 0.0
        %627 = vmatprep.mubr.f32.mxu0 0.0
        %628 = vmatmul.mubr.f32.gmra.mrb[0].mxu0 %v558
        %v629 = vpop.f32.mrb[0].mxu0
        %v630 = vadd.f32 0.0, %v629
        %v631 = vpop.f32.mrb[0].mxu0
        %632 = vmatprep.mubr.f32.mxu0 0.0
        %633 = vmatmul.mubr.f32.gmra.mrb[0].mxu0 %v561
        %v634 = vpop.f32.mrb[0].mxu0
        %v635 = vadd.f32 0.0, %v634
        %v636 = vpop.f32.mrb[0].mxu0
        %637 = vdwg.mxu0
        %640 = vrot.lane.b32.xlu0 %v539, 112
        %v641 = vpop.permute.xlu0 %640
        %642 = vrot.lane.b32.xlu0 %v544, 112
        %v643 = vpop.permute.xlu0 %642
        %v647 = vsel %vm459, %v449, 0
        %v650 = vsel %vm459, %v450, 0
        %652 = vmatprep.subr.mxu0 0.0
        %653 = vmatpush1.msra.mxu0 %v641
        %654 = vmatprep.subr.mxu0 0.0
        %655 = vmatpush1.msra.mxu0 %v643
        %656 = vmatprep.subr.mxu0 0.0
        %657 = vmatpush1.msra.mxu0 0.0
        %658 = vmatprep.subr.mxu0 0.0
        %659 = vmatpush1.msra.mxu0 0.0
        %660 = vmatprep.subr.mxu0 0.0
        %661 = vmatpush1.msra.mxu0 0.0
        %662 = vmatprep.subr.mxu0 0.0
        %663 = vmatpush1.msra.mxu0 0.0
        %664 = vmatprep.subr.mxu0 0.0
        %665 = vmatpush1.msra.mxu0 0.0
        %666 = vmatprep.subr.mxu0 0.0
        %667 = vmatpush1.msra.mxu0 0.0
        %668 = vmatprep.subr.mxu0 0.0
        %669 = vmatpush1.msra.mxu0 0.0
        %670 = vmatprep.subr.mxu0 0.0
        %671 = vmatpush1.msra.mxu0 0.0
        %672 = vmatprep.subr.mxu0 0.0
        %673 = vmatpush1.msra.mxu0 0.0
        %674 = vmatprep.subr.mxu0 0.0
        %675 = vmatpush1.msra.mxu0 0.0
        %676 = vmatprep.subr.mxu0 0.0
        %677 = vmatpush1.msra.mxu0 0.0
        %678 = vmatprep.subr.mxu0 0.0
        %679 = vmatpush1.msra.mxu0 0.0
        %680 = vmatprep.subr.mxu0 0.0
        %681 = vmatpush1.msra.mxu0 0.0
        %682 = vmatprep.subr.mxu0 0.0
        %683 = vmatpush1.msra.mxu0 0.0
        %684 = vmatprep.subr.mxu0 0.0
        %685 = vmatpush1.msra.mxu0 0.0
        %686 = vmatprep.subr.mxu0 0.0
        %687 = vmatpush1.msra.mxu0 0.0
        %688 = vmatprep.subr.mxu0 0.0
        %689 = vmatpush1.msra.mxu0 0.0
        %690 = vmatprep.subr.mxu0 0.0
        %691 = vmatpush1.msra.mxu0 0.0
        %692 = vmatprep.subr.mxu0 0.0
        %693 = vmatpush1.msra.mxu0 0.0
        %694 = vmatprep.subr.mxu0 0.0
        %695 = vmatpush1.msra.mxu0 0.0
        %696 = vmatprep.subr.mxu0 0.0
        %697 = vmatpush1.msra.mxu0 0.0
        %698 = vmatprep.subr.mxu0 0.0
        %699 = vmatpush1.msra.mxu0 0.0
        %700 = vmatprep.subr.mxu0 0.0
        %701 = vmatpush1.msra.mxu0 0.0
        %702 = vmatprep.subr.mxu0 0.0
        %703 = vmatpush1.msra.mxu0 0.0
        %704 = vmatprep.subr.mxu0 0.0
        %705 = vmatpush1.msra.mxu0 0.0
        %706 = vmatprep.subr.mxu0 0.0
        %707 = vmatpush1.msra.mxu0 0.0
        %708 = vmatprep.subr.mxu0 0.0
        %709 = vmatpush1.msra.mxu0 0.0
        %710 = vmatprep.subr.mxu0 0.0
        %711 = vmatpush1.msra.mxu0 0.0
        %712 = vmatprep.subr.mxu0 0.0
        %713 = vmatpush1.msra.mxu0 0.0
        %714 = vmatprep.subr.mxu0 0.0
        %715 = vmatpush1.msra.mxu0 0.0
        %716 = vmatprep.mubr.f32.mxu0 0.0
        %717 = vmatmul.mubr.f32.gmra.mrb[0].mxu0 %v647
        %v718 = vpop.f32.mrb[0].mxu0
        %v719 = vadd.f32 0.0, %v718
        %v720 = vpop.f32.mrb[0].mxu0
        %721 = vmatprep.mubr.f32.mxu0 0.0
        %722 = vmatmul.mubr.f32.gmra.mrb[0].mxu0 %v650
        %v723 = vpop.f32.mrb[0].mxu0
        %v724 = vadd.f32 0.0, %v723
        %v725 = vpop.f32.mrb[0].mxu0
        %726 = vdwg.mxu0
        %727 = vrot.lane.b32.xlu0 %v539, 16
        %v728 = vpop.permute.xlu0 %727
        %729 = vrot.lane.b32.xlu0 %v544, 16
        %v730 = vpop.permute.xlu0 %729
        %v733 = vsub.f32 %v539, %v728
        %v734 = vsub.f32 %v544, %v730
        %v735 = vadd.f32 %v630, %v719
        %v736 = vadd.f32 %v635, %v724
        %739 = vrot.lane.b32.xlu0 %v733, 112
        %v740 = vpop.permute.xlu0 %739
        %741 = vrot.lane.b32.xlu0 %v734, 112
        %v742 = vpop.permute.xlu0 %741
        %v746 = vsel %vm459, %v451, 0
        %v749 = vsel %vm459, %v452, 0
        %751 = vmatprep.subr.mxu0 0.0
        %752 = vmatpush1.msra.mxu0 %v740
        %753 = vmatprep.subr.mxu0 0.0
        %754 = vmatpush1.msra.mxu0 %v742
        %755 = vmatprep.subr.mxu0 0.0
        %756 = vmatpush1.msra.mxu0 0.0
        %757 = vmatprep.subr.mxu0 0.0
        %758 = vmatpush1.msra.mxu0 0.0
        %759 = vmatprep.subr.mxu0 0.0
        %760 = vmatpush1.msra.mxu0 0.0
        %761 = vmatprep.subr.mxu0 0.0
        %762 = vmatpush1.msra.mxu0 0.0
        %763 = vmatprep.subr.mxu0 0.0
        %764 = vmatpush1.msra.mxu0 0.0
        %765 = vmatprep.subr.mxu0 0.0
        %766 = vmatpush1.msra.mxu0 0.0
        %767 = vmatprep.subr.mxu0 0.0
        %768 = vmatpush1.msra.mxu0 0.0
        %769 = vmatprep.subr.mxu0 0.0
        %770 = vmatpush1.msra.mxu0 0.0
        %771 = vmatprep.subr.mxu0 0.0
        %772 = vmatpush1.msra.mxu0 0.0
        %773 = vmatprep.subr.mxu0 0.0
        %774 = vmatpush1.msra.mxu0 0.0
        %775 = vmatprep.subr.mxu0 0.0
        %776 = vmatpush1.msra.mxu0 0.0
        %777 = vmatprep.subr.mxu0 0.0
        %778 = vmatpush1.msra.mxu0 0.0
        %779 = vmatprep.subr.mxu0 0.0
        %780 = vmatpush1.msra.mxu0 0.0
        %781 = vmatprep.subr.mxu0 0.0
        %782 = vmatpush1.msra.mxu0 0.0
        %783 = vmatprep.subr.mxu0 0.0
        %784 = vmatpush1.msra.mxu0 0.0
        %785 = vmatprep.subr.mxu0 0.0
        %786 = vmatpush1.msra.mxu0 0.0
        %787 = vmatprep.subr.mxu0 0.0
        %788 = vmatpush1.msra.mxu0 0.0
        %789 = vmatprep.subr.mxu0 0.0
        %790 = vmatpush1.msra.mxu0 0.0
        %791 = vmatprep.subr.mxu0 0.0
        %792 = vmatpush1.msra.mxu0 0.0
        %793 = vmatprep.subr.mxu0 0.0
        %794 = vmatpush1.msra.mxu0 0.0
        %795 = vmatprep.subr.mxu0 0.0
        %796 = vmatpush1.msra.mxu0 0.0
        %797 = vmatprep.subr.mxu0 0.0
        %798 = vmatpush1.msra.mxu0 0.0
        %799 = vmatprep.subr.mxu0 0.0
        %800 = vmatpush1.msra.mxu0 0.0
        %801 = vmatprep.subr.mxu0 0.0
        %802 = vmatpush1.msra.mxu0 0.0
        %803 = vmatprep.subr.mxu0 0.0
        %804 = vmatpush1.msra.mxu0 0.0
        %805 = vmatprep.subr.mxu0 0.0
        %806 = vmatpush1.msra.mxu0 0.0
        %807 = vmatprep.subr.mxu0 0.0
        %808 = vmatpush1.msra.mxu0 0.0
        %809 = vmatprep.subr.mxu0 0.0
        %810 = vmatpush1.msra.mxu0 0.0
        %811 = vmatprep.subr.mxu0 0.0
        %812 = vmatpush1.msra.mxu0 0.0
        %813 = vmatprep.subr.mxu0 0.0
        %814 = vmatpush1.msra.mxu0 0.0
        %815 = vmatprep.mubr.f32.mxu0 0.0
        %816 = vmatmul.mubr.f32.gmra.mrb[0].mxu0 %v746
        %v817 = vpop.f32.mrb[0].mxu0
        %v818 = vadd.f32 %v630, %v817
        %v819 = vpop.f32.mrb[0].mxu0
        %820 = vmatprep.mubr.f32.mxu0 0.0
        %821 = vmatmul.mubr.f32.gmra.mrb[0].mxu0 %v749
        %v822 = vpop.f32.mrb[0].mxu0
        %v823 = vadd.f32 %v635, %v822
        %v824 = vpop.f32.mrb[0].mxu0
        %825 = vdwg.mxu0
        %v826 = vsub.f32 %v818, %v719
        %v827 = vsub.f32 %v823, %v724
        %v828 = vld [vmem:[%s380] sm:$0xff]
        %v829 = vld [vmem:[%s380 + $0x8] sm:$0xff]
        %v830 = vld [vmem:[%s380 + $0x10] sm:$0xff]
        %v831 = vld [vmem:[%s380 + $0x18] sm:$0xff]
        %v832 = vsub.f32 %v828, %v735
        %v833 = vsub.f32 %v829, %v736
        %v834 = vmul.f32 %v453, %v832
        %v835 = vmul.f32 %v454, %v833
        %v836 = vadd.f32 %v735, %v834
        %v837 = vadd.f32 %v736, %v835
        %v838 = vsub.f32 %v830, %v826
        %v839 = vsub.f32 %v831, %v827
        %v840 = vmul.f32 %v453, %v838
        %v841 = vmul.f32 %v454, %v839
        %v842 = vadd.f32 %v826, %v840
        %v843 = vadd.f32 %v827, %v841
        %844 = vmatprep.subr.mxu0 0.0
        %845 = vmatpush1.msra.mxu0 %v836
        %846 = vmatprep.subr.mxu0 0.0
        %847 = vmatpush1.msra.mxu0 %v837
        %848 = vmatprep.subr.mxu0 0.0
        %849 = vmatpush1.msra.mxu0 0.0
        %850 = vmatprep.subr.mxu0 0.0
        %851 = vmatpush1.msra.mxu0 0.0
        %852 = vmatprep.subr.mxu0 0.0
        %853 = vmatpush1.msra.mxu0 0.0
        %854 = vmatprep.subr.mxu0 0.0
        %855 = vmatpush1.msra.mxu0 0.0
        %856 = vmatprep.subr.mxu0 0.0
        %857 = vmatpush1.msra.mxu0 0.0
        %858 = vmatprep.subr.mxu0 0.0
        %859 = vmatpush1.msra.mxu0 0.0
        %860 = vmatprep.subr.mxu0 0.0
        %861 = vmatpush1.msra.mxu0 0.0
        %862 = vmatprep.subr.mxu0 0.0
        %863 = vmatpush1.msra.mxu0 0.0
        %864 = vmatprep.subr.mxu0 0.0
        %865 = vmatpush1.msra.mxu0 0.0
        %866 = vmatprep.subr.mxu0 0.0
        %867 = vmatpush1.msra.mxu0 0.0
        %868 = vmatprep.subr.mxu0 0.0
        %869 = vmatpush1.msra.mxu0 0.0
        %870 = vmatprep.subr.mxu0 0.0
        %871 = vmatpush1.msra.mxu0 0.0
        %872 = vmatprep.subr.mxu0 0.0
        %873 = vmatpush1.msra.mxu0 0.0
        %874 = vmatprep.subr.mxu0 0.0
        %875 = vmatpush1.msra.mxu0 0.0
        %876 = vmatprep.subr.mxu0 0.0
        %877 = vmatpush1.msra.mxu0 0.0
        %878 = vmatprep.subr.mxu0 0.0
        %879 = vmatpush1.msra.mxu0 0.0
        %880 = vmatprep.subr.mxu0 0.0
        %881 = vmatpush1.msra.mxu0 0.0
        %882 = vmatprep.subr.mxu0 0.0
        %883 = vmatpush1.msra.mxu0 0.0
        %884 = vmatprep.subr.mxu0 0.0
        %885 = vmatpush1.msra.mxu0 0.0
        %886 = vmatprep.subr.mxu0 0.0
        %887 = vmatpush1.msra.mxu0 0.0
        %888 = vmatprep.subr.mxu0 0.0
        %889 = vmatpush1.msra.mxu0 0.0
        %890 = vmatprep.subr.mxu0 0.0
        %891 = vmatpush1.msra.mxu0 0.0
        %892 = vmatprep.subr.mxu0 0.0
        %893 = vmatpush1.msra.mxu0 0.0
        %894 = vmatprep.subr.mxu0 0.0
        %895 = vmatpush1.msra.mxu0 0.0
        %896 = vmatprep.subr.mxu0 0.0
        %897 = vmatpush1.msra.mxu0 0.0
        %898 = vmatprep.subr.mxu0 0.0
        %899 = vmatpush1.msra.mxu0 0.0
        %900 = vmatprep.subr.mxu0 0.0
        %901 = vmatpush1.msra.mxu0 0.0
        %902 = vmatprep.subr.mxu0 0.0
        %903 = vmatpush1.msra.mxu0 0.0
        %904 = vmatprep.subr.mxu0 0.0
        %905 = vmatpush1.msra.mxu0 0.0
        %906 = vmatprep.subr.mxu0 0.0
        %907 = vmatpush1.msra.mxu0 0.0
        %908 = vmatprep.mubr.f32.mxu0 0.0
        %909 = vmatmul.mubr.f32.gmra.mrb[0].mxu0 %v558
        %v910 = vpop.f32.mrb[0].mxu0
        %v911 = vadd.f32 0.0, %v910
        %v912 = vpop.f32.mrb[0].mxu0
        %913 = vmatprep.mubr.f32.mxu0 0.0
        %914 = vmatmul.mubr.f32.gmra.mrb[0].mxu0 %v561
        %v915 = vpop.f32.mrb[0].mxu0
        %v916 = vadd.f32 0.0, %v915
        %v917 = vpop.f32.mrb[0].mxu0
        %918 = vdwg.mxu0
        %919 = vmatprep.subr.mxu0 0.0
        %920 = vmatpush1.msra.mxu0 %v842
        %921 = vmatprep.subr.mxu0 0.0
        %922 = vmatpush1.msra.mxu0 %v843
        %923 = vmatprep.subr.mxu0 0.0
        %924 = vmatpush1.msra.mxu0 0.0
        %925 = vmatprep.subr.mxu0 0.0
        %926 = vmatpush1.msra.mxu0 0.0
        %927 = vmatprep.subr.mxu0 0.0
        %928 = vmatpush1.msra.mxu0 0.0
        %929 = vmatprep.subr.mxu0 0.0
        %930 = vmatpush1.msra.mxu0 0.0
        %931 = vmatprep.subr.mxu0 0.0
        %932 = vmatpush1.msra.mxu0 0.0
        %933 = vmatprep.subr.mxu0 0.0
        %934 = vmatpush1.msra.mxu0 0.0
        %935 = vmatprep.subr.mxu0 0.0
        %936 = vmatpush1.msra.mxu0 0.0
        %937 = vmatprep.subr.mxu0 0.0
        %938 = vmatpush1.msra.mxu0 0.0
        %939 = vmatprep.subr.mxu0 0.0
        %940 = vmatpush1.msra.mxu0 0.0
        %941 = vmatprep.subr.mxu0 0.0
        %942 = vmatpush1.msra.mxu0 0.0
        %943 = vmatprep.subr.mxu0 0.0
        %944 = vmatpush1.msra.mxu0 0.0
        %945 = vmatprep.subr.mxu0 0.0
        %946 = vmatpush1.msra.mxu0 0.0
        %947 = vmatprep.subr.mxu0 0.0
        %948 = vmatpush1.msra.mxu0 0.0
        %949 = vmatprep.subr.mxu0 0.0
        %950 = vmatpush1.msra.mxu0 0.0
        %951 = vmatprep.subr.mxu0 0.0
        %952 = vmatpush1.msra.mxu0 0.0
        %953 = vmatprep.subr.mxu0 0.0
        %954 = vmatpush1.msra.mxu0 0.0
        %955 = vmatprep.subr.mxu0 0.0
        %956 = vmatpush1.msra.mxu0 0.0
        %957 = vmatprep.subr.mxu0 0.0
        %958 = vmatpush1.msra.mxu0 0.0
        %959 = vmatprep.subr.mxu0 0.0
        %960 = vmatpush1.msra.mxu0 0.0
        %961 = vmatprep.subr.mxu0 0.0
        %962 = vmatpush1.msra.mxu0 0.0
        %963 = vmatprep.subr.mxu0 0.0
        %964 = vmatpush1.msra.mxu0 0.0
        %965 = vmatprep.subr.mxu0 0.0
        %966 = vmatpush1.msra.mxu0 0.0
        %967 = vmatprep.subr.mxu0 0.0
        %968 = vmatpush1.msra.mxu0 0.0
        %969 = vmatprep.subr.mxu0 0.0
        %970 = vmatpush1.msra.mxu0 0.0
        %971 = vmatprep.subr.mxu0 0.0
        %972 = vmatpush1.msra.mxu0 0.0
        %973 = vmatprep.subr.mxu0 0.0
        %974 = vmatpush1.msra.mxu0 0.0
        %975 = vmatprep.subr.mxu0 0.0
        %976 = vmatpush1.msra.mxu0 0.0
        %977 = vmatprep.subr.mxu0 0.0
        %978 = vmatpush1.msra.mxu0 0.0
        %979 = vmatprep.subr.mxu0 0.0
        %980 = vmatpush1.msra.mxu0 0.0
        %981 = vmatprep.subr.mxu0 0.0
        %982 = vmatpush1.msra.mxu0 0.0
        %983 = vmatprep.mubr.f32.mxu0 0.0
        %984 = vmatmul.mubr.f32.gmra.mrb[0].mxu0 %v647
        %v985 = vpop.f32.mrb[0].mxu0
        %v986 = vadd.f32 0.0, %v985
        %v987 = vpop.f32.mrb[0].mxu0
        %988 = vmatprep.mubr.f32.mxu0 0.0
        %989 = vmatmul.mubr.f32.gmra.mrb[0].mxu0 %v650
        %v990 = vpop.f32.mrb[0].mxu0
        %v991 = vadd.f32 0.0, %v990
        %v992 = vpop.f32.mrb[0].mxu0
        %993 = vdwg.mxu0
        %v994 = vadd.f32 %v836, %v842
        %v995 = vadd.f32 %v837, %v843
        %996 = vmatprep.subr.mxu0 0.0
        %997 = vmatpush1.msra.mxu0 %v994
        %998 = vmatprep.subr.mxu0 0.0
        %999 = vmatpush1.msra.mxu0 %v995
        %1000 = vmatprep.subr.mxu0 0.0
        %1001 = vmatpush1.msra.mxu0 0.0
        %1002 = vmatprep.subr.mxu0 0.0
        %1003 = vmatpush1.msra.mxu0 0.0
        %1004 = vmatprep.subr.mxu0 0.0
        %1005 = vmatpush1.msra.mxu0 0.0
        %1006 = vmatprep.subr.mxu0 0.0
        %1007 = vmatpush1.msra.mxu0 0.0
        %1008 = vmatprep.subr.mxu0 0.0
        %1009 = vmatpush1.msra.mxu0 0.0
        %1010 = vmatprep.subr.mxu0 0.0
        %1011 = vmatpush1.msra.mxu0 0.0
        %1012 = vmatprep.subr.mxu0 0.0
        %1013 = vmatpush1.msra.mxu0 0.0
        %1014 = vmatprep.subr.mxu0 0.0
        %1015 = vmatpush1.msra.mxu0 0.0
        %1016 = vmatprep.subr.mxu0 0.0
        %1017 = vmatpush1.msra.mxu0 0.0
        %1018 = vmatprep.subr.mxu0 0.0
        %1019 = vmatpush1.msra.mxu0 0.0
        %1020 = vmatprep.subr.mxu0 0.0
        %1021 = vmatpush1.msra.mxu0 0.0
        %1022 = vmatprep.subr.mxu0 0.0
        %1023 = vmatpush1.msra.mxu0 0.0
        %1024 = vmatprep.subr.mxu0 0.0
        %1025 = vmatpush1.msra.mxu0 0.0
        %1026 = vmatprep.subr.mxu0 0.0
        %1027 = vmatpush1.msra.mxu0 0.0
        %1028 = vmatprep.subr.mxu0 0.0
        %1029 = vmatpush1.msra.mxu0 0.0
        %1030 = vmatprep.subr.mxu0 0.0
        %1031 = vmatpush1.msra.mxu0 0.0
        %1032 = vmatprep.subr.mxu0 0.0
        %1033 = vmatpush1.msra.mxu0 0.0
        %1034 = vmatprep.subr.mxu0 0.0
        %1035 = vmatpush1.msra.mxu0 0.0
        %1036 = vmatprep.subr.mxu0 0.0
        %1037 = vmatpush1.msra.mxu0 0.0
        %1038 = vmatprep.subr.mxu0 0.0
        %1039 = vmatpush1.msra.mxu0 0.0
        %1040 = vmatprep.subr.mxu0 0.0
        %1041 = vmatpush1.msra.mxu0 0.0
        %1042 = vmatprep.subr.mxu0 0.0
        %1043 = vmatpush1.msra.mxu0 0.0
        %1044 = vmatprep.subr.mxu0 0.0
        %1045 = vmatpush1.msra.mxu0 0.0
        %1046 = vmatprep.subr.mxu0 0.0
        %1047 = vmatpush1.msra.mxu0 0.0
        %1048 = vmatprep.subr.mxu0 0.0
        %1049 = vmatpush1.msra.mxu0 0.0
        %1050 = vmatprep.subr.mxu0 0.0
        %1051 = vmatpush1.msra.mxu0 0.0
        %1052 = vmatprep.subr.mxu0 0.0
        %1053 = vmatpush1.msra.mxu0 0.0
        %1054 = vmatprep.subr.mxu0 0.0
        %1055 = vmatpush1.msra.mxu0 0.0
        %1056 = vmatprep.subr.mxu0 0.0
        %1057 = vmatpush1.msra.mxu0 0.0
        %1058 = vmatprep.subr.mxu0 0.0
        %1059 = vmatpush1.msra.mxu0 0.0
        %1060 = vmatprep.mubr.f32.mxu0 0.0
        %1061 = vmatmul.mubr.f32.gmra.mrb[0].mxu0 %v746
        %v1062 = vpop.f32.mrb[0].mxu0
        %v1063 = vadd.f32 0.0, %v1062
        %v1064 = vpop.f32.mrb[0].mxu0
        %1065 = vmatprep.mubr.f32.mxu0 0.0
        %1066 = vmatmul.mubr.f32.gmra.mrb[0].mxu0 %v749
        %v1067 = vpop.f32.mrb[0].mxu0
        %v1068 = vadd.f32 0.0, %v1067
        %v1069 = vpop.f32.mrb[0].mxu0
        %1070 = vdwg.mxu0
        %v1071 = vsub.f32 %v911, %v986
        %v1072 = vsub.f32 %v916, %v991
        %v1073 = vsub.f32 %v1063, %v911
        %v1074 = vsub.f32 %v1068, %v916
        %v1075 = vsub.f32 %v1073, %v986
        %v1076 = vsub.f32 %v1074, %v991
        %1079 = vrot.lane.b32.xlu0 %v1075, 16
        %v1080 = vpop.permute.xlu0 %1079
        %1081 = vrot.lane.b32.xlu0 %v1076, 16
        %v1082 = vpop.permute.xlu0 %1081
        %v1085 = vsel %vm459, %v1071, %v1080
        %v1086 = vsel %vm459, %v1072, %v1082
        %vm1087 = vcmask 261120
        %v1089 = vsel %vm1087, %v1085, 0
        %v1092 = vsel %vm1087, %v1086, 0
        %1094 = vmatprep.subr.mxu0 0.0
        %1095 = vmatpush1.msra.mxu0 %v443
        %1096 = vmatprep.subr.mxu0 0.0
        %1097 = vmatpush1.msra.mxu0 %v444
        %1098 = vmatprep.subr.mxu0 0.0
        %1099 = vmatpush1.msra.mxu0 %v445
        %1100 = vmatprep.subr.mxu0 0.0
        %1101 = vmatpush1.msra.mxu0 %v446
        %1102 = vmatprep.subr.mxu0 0.0
        %1103 = vmatpush1.msra.mxu0 0.0
        %1104 = vmatprep.subr.mxu0 0.0
        %1105 = vmatpush1.msra.mxu0 0.0
        %1106 = vmatprep.subr.mxu0 0.0
        %1107 = vmatpush1.msra.mxu0 0.0
        %1108 = vmatprep.subr.mxu0 0.0
        %1109 = vmatpush1.msra.mxu0 0.0
        %1110 = vmatprep.subr.mxu0 0.0
        %1111 = vmatpush1.msra.mxu0 0.0
        %1112 = vmatprep.subr.mxu0 0.0
        %1113 = vmatpush1.msra.mxu0 0.0
        %1114 = vmatprep.subr.mxu0 0.0
        %1115 = vmatpush1.msra.mxu0 0.0
        %1116 = vmatprep.subr.mxu0 0.0
        %1117 = vmatpush1.msra.mxu0 0.0
        %1118 = vmatprep.subr.mxu0 0.0
        %1119 = vmatpush1.msra.mxu0 0.0
        %1120 = vmatprep.subr.mxu0 0.0
        %1121 = vmatpush1.msra.mxu0 0.0
        %1122 = vmatprep.subr.mxu0 0.0
        %1123 = vmatpush1.msra.mxu0 0.0
        %1124 = vmatprep.subr.mxu0 0.0
        %1125 = vmatpush1.msra.mxu0 0.0
        %1126 = vmatprep.subr.mxu0 0.0
        %1127 = vmatpush1.msra.mxu0 0.0
        %1128 = vmatprep.subr.mxu0 0.0
        %1129 = vmatpush1.msra.mxu0 0.0
        %1130 = vmatprep.subr.mxu0 0.0
        %1131 = vmatpush1.msra.mxu0 0.0
        %1132 = vmatprep.subr.mxu0 0.0
        %1133 = vmatpush1.msra.mxu0 0.0
        %1134 = vmatprep.subr.mxu0 0.0
        %1135 = vmatpush1.msra.mxu0 0.0
        %1136 = vmatprep.subr.mxu0 0.0
        %1137 = vmatpush1.msra.mxu0 0.0
        %1138 = vmatprep.subr.mxu0 0.0
        %1139 = vmatpush1.msra.mxu0 0.0
        %1140 = vmatprep.subr.mxu0 0.0
        %1141 = vmatpush1.msra.mxu0 0.0
        %1142 = vmatprep.subr.mxu0 0.0
        %1143 = vmatpush1.msra.mxu0 0.0
        %1144 = vmatprep.subr.mxu0 0.0
        %1145 = vmatpush1.msra.mxu0 0.0
        %1146 = vmatprep.subr.mxu0 0.0
        %1147 = vmatpush1.msra.mxu0 0.0
        %1148 = vmatprep.subr.mxu0 0.0
        %1149 = vmatpush1.msra.mxu0 0.0
        %1150 = vmatprep.subr.mxu0 0.0
        %1151 = vmatpush1.msra.mxu0 0.0
        %1152 = vmatprep.subr.mxu0 0.0
        %1153 = vmatpush1.msra.mxu0 0.0
        %1154 = vmatprep.subr.mxu0 0.0
        %1155 = vmatpush1.msra.mxu0 0.0
        %1156 = vmatprep.subr.mxu0 0.0
        %1157 = vmatpush1.msra.mxu0 0.0
        %1158 = vmatprep.mubr.f32.mxu0 0.0
        %1159 = vmatmul.mubr.f32.gmra.mrb[0].mxu0 %v1089
        %v1160 = vpop.f32.mrb[0].mxu0
        %v1161 = vadd.f32 0.0, %v1160
        %v1162 = vpop.f32.mrb[0].mxu0
        %1163 = vmatprep.mubr.f32.mxu0 0.0
        %1164 = vmatmul.mubr.f32.gmra.mrb[0].mxu0 %v1092
        %v1165 = vpop.f32.mrb[0].mxu0
        %v1166 = vadd.f32 0.0, %v1165
        %v1167 = vpop.f32.mrb[0].mxu0
        %1168 = vdwg.mxu0
        %1169 = vst [vmem:[%s437] sm:$0xff] %v1161
        %1170 = vst [vmem:[%s437 + $0x8] sm:$0xff] %v1166
        %1171 = vmatprep.subr.mxu0 0.0
        %1172 = vmatpush1.msra.mxu0 %v549
        %1173 = vmatprep.subr.mxu0 0.0
        %1174 = vmatpush1.msra.mxu0 %v554
        %1175 = vmatprep.subr.mxu0 0.0
        %1176 = vmatpush1.msra.mxu0 0.0
        %1177 = vmatprep.subr.mxu0 0.0
        %1178 = vmatpush1.msra.mxu0 0.0
        %1179 = vmatprep.subr.mxu0 0.0
        %1180 = vmatpush1.msra.mxu0 0.0
        %1181 = vmatprep.subr.mxu0 0.0
        %1182 = vmatpush1.msra.mxu0 0.0
        %1183 = vmatprep.subr.mxu0 0.0
        %1184 = vmatpush1.msra.mxu0 0.0
        %1185 = vmatprep.subr.mxu0 0.0
        %1186 = vmatpush1.msra.mxu0 0.0
        %1187 = vmatprep.subr.mxu0 0.0
        %1188 = vmatpush1.msra.mxu0 0.0
        %1189 = vmatprep.subr.mxu0 0.0
        %1190 = vmatpush1.msra.mxu0 0.0
        %1191 = vmatprep.subr.mxu0 0.0
        %1192 = vmatpush1.msra.mxu0 0.0
        %1193 = vmatprep.subr.mxu0 0.0
        %1194 = vmatpush1.msra.mxu0 0.0
        %1195 = vmatprep.subr.mxu0 0.0
        %1196 = vmatpush1.msra.mxu0 0.0
        %1197 = vmatprep.subr.mxu0 0.0
        %1198 = vmatpush1.msra.mxu0 0.0
        %1199 = vmatprep.subr.mxu0 0.0
        %1200 = vmatpush1.msra.mxu0 0.0
        %1201 = vmatprep.subr.mxu0 0.0
        %1202 = vmatpush1.msra.mxu0 0.0
        %1203 = vmatprep.subr.mxu0 0.0
        %1204 = vmatpush1.msra.mxu0 0.0
        %1205 = vmatprep.subr.mxu0 0.0
        %1206 = vmatpush1.msra.mxu0 0.0
        %1207 = vmatprep.subr.mxu0 0.0
        %1208 = vmatpush1.msra.mxu0 0.0
        %1209 = vmatprep.subr.mxu0 0.0
        %1210 = vmatpush1.msra.mxu0 0.0
        %1211 = vmatprep.subr.mxu0 0.0
        %1212 = vmatpush1.msra.mxu0 0.0
        %1213 = vmatprep.subr.mxu0 0.0
        %1214 = vmatpush1.msra.mxu0 0.0
        %1215 = vmatprep.subr.mxu0 0.0
        %1216 = vmatpush1.msra.mxu0 0.0
        %1217 = vmatprep.subr.mxu0 0.0
        %1218 = vmatpush1.msra.mxu0 0.0
        %1219 = vmatprep.subr.mxu0 0.0
        %1220 = vmatpush1.msra.mxu0 0.0
        %1221 = vmatprep.subr.mxu0 0.0
        %1222 = vmatpush1.msra.mxu0 0.0
        %1223 = vmatprep.subr.mxu0 0.0
        %1224 = vmatpush1.msra.mxu0 0.0
        %1225 = vmatprep.subr.mxu0 0.0
        %1226 = vmatpush1.msra.mxu0 0.0
        %1227 = vmatprep.subr.mxu0 0.0
        %1228 = vmatpush1.msra.mxu0 0.0
        %1229 = vmatprep.subr.mxu0 0.0
        %1230 = vmatpush1.msra.mxu0 0.0
        %1231 = vmatprep.subr.mxu0 0.0
        %1232 = vmatpush1.msra.mxu0 0.0
        %1233 = vmatprep.subr.mxu0 0.0
        %1234 = vmatpush1.msra.mxu0 0.0
        %1235 = vmatprep.mubr.f32.mxu0 0.0
        %1236 = vmatmul.mubr.f32.gmra.mrb[0].mxu0 %v558
        %v1237 = vpop.f32.mrb[0].mxu0
        %v1238 = vadd.f32 0.0, %v1237
        %v1239 = vpop.f32.mrb[0].mxu0
        %1240 = vmatprep.mubr.f32.mxu0 0.0
        %1241 = vmatmul.mubr.f32.gmra.mrb[0].mxu0 %v561
        %v1242 = vpop.f32.mrb[0].mxu0
        %v1243 = vadd.f32 0.0, %v1242
        %v1244 = vpop.f32.mrb[0].mxu0
        %1245 = vdwg.mxu0
        %1248 = vrot.lane.b32.xlu0 %v549, 112
        %v1249 = vpop.permute.xlu0 %1248
        %1250 = vrot.lane.b32.xlu0 %v554, 112
        %v1251 = vpop.permute.xlu0 %1250
        %1254 = vmatprep.subr.mxu0 0.0
        %1255 = vmatpush1.msra.mxu0 %v1249
        %1256 = vmatprep.subr.mxu0 0.0
        %1257 = vmatpush1.msra.mxu0 %v1251
        %1258 = vmatprep.subr.mxu0 0.0
        %1259 = vmatpush1.msra.mxu0 0.0
        %1260 = vmatprep.subr.mxu0 0.0
        %1261 = vmatpush1.msra.mxu0 0.0
        %1262 = vmatprep.subr.mxu0 0.0
        %1263 = vmatpush1.msra.mxu0 0.0
        %1264 = vmatprep.subr.mxu0 0.0
        %1265 = vmatpush1.msra.mxu0 0.0
        %1266 = vmatprep.subr.mxu0 0.0
        %1267 = vmatpush1.msra.mxu0 0.0
        %1268 = vmatprep.subr.mxu0 0.0
        %1269 = vmatpush1.msra.mxu0 0.0
        %1270 = vmatprep.subr.mxu0 0.0
        %1271 = vmatpush1.msra.mxu0 0.0
        %1272 = vmatprep.subr.mxu0 0.0
        %1273 = vmatpush1.msra.mxu0 0.0
        %1274 = vmatprep.subr.mxu0 0.0
        %1275 = vmatpush1.msra.mxu0 0.0
        %1276 = vmatprep.subr.mxu0 0.0
        %1277 = vmatpush1.msra.mxu0 0.0
        %1278 = vmatprep.subr.mxu0 0.0
        %1279 = vmatpush1.msra.mxu0 0.0
        %1280 = vmatprep.subr.mxu0 0.0
        %1281 = vmatpush1.msra.mxu0 0.0
        %1282 = vmatprep.subr.mxu0 0.0
        %1283 = vmatpush1.msra.mxu0 0.0
        %1284 = vmatprep.subr.mxu0 0.0
        %1285 = vmatpush1.msra.mxu0 0.0
        %1286 = vmatprep.subr.mxu0 0.0
        %1287 = vmatpush1.msra.mxu0 0.0
        %1288 = vmatprep.subr.mxu0 0.0
        %1289 = vmatpush1.msra.mxu0 0.0
        %1290 = vmatprep.subr.mxu0 0.0
        %1291 = vmatpush1.msra.mxu0 0.0
        %1292 = vmatprep.subr.mxu0 0.0
        %1293 = vmatpush1.msra.mxu0 0.0
        %1294 = vmatprep.subr.mxu0 0.0
        %1295 = vmatpush1.msra.mxu0 0.0
        %1296 = vmatprep.subr.mxu0 0.0
        %1297 = vmatpush1.msra.mxu0 0.0
        %1298 = vmatprep.subr.mxu0 0.0
        %1299 = vmatpush1.msra.mxu0 0.0
        %1300 = vmatprep.subr.mxu0 0.0
        %1301 = vmatpush1.msra.mxu0 0.0
        %1302 = vmatprep.subr.mxu0 0.0
        %1303 = vmatpush1.msra.mxu0 0.0
        %1304 = vmatprep.subr.mxu0 0.0
        %1305 = vmatpush1.msra.mxu0 0.0
        %1306 = vmatprep.subr.mxu0 0.0
        %1307 = vmatpush1.msra.mxu0 0.0
        %1308 = vmatprep.subr.mxu0 0.0
        %1309 = vmatpush1.msra.mxu0 0.0
        %1310 = vmatprep.subr.mxu0 0.0
        %1311 = vmatpush1.msra.mxu0 0.0
        %1312 = vmatprep.subr.mxu0 0.0
        %1313 = vmatpush1.msra.mxu0 0.0
        %1314 = vmatprep.subr.mxu0 0.0
        %1315 = vmatpush1.msra.mxu0 0.0
        %1316 = vmatprep.subr.mxu0 0.0
        %1317 = vmatpush1.msra.mxu0 0.0
        %1318 = vmatprep.mubr.f32.mxu0 0.0
        %1319 = vmatmul.mubr.f32.gmra.mrb[0].mxu0 %v647
        %v1320 = vpop.f32.mrb[0].mxu0
        %v1321 = vadd.f32 0.0, %v1320
        %v1322 = vpop.f32.mrb[0].mxu0
        %1323 = vmatprep.mubr.f32.mxu0 0.0
        %1324 = vmatmul.mubr.f32.gmra.mrb[0].mxu0 %v650
        %v1325 = vpop.f32.mrb[0].mxu0
        %v1326 = vadd.f32 0.0, %v1325
        %v1327 = vpop.f32.mrb[0].mxu0
        %1328 = vdwg.mxu0
        %1329 = vrot.lane.b32.xlu0 %v549, 16
        %v1330 = vpop.permute.xlu0 %1329
        %1331 = vrot.lane.b32.xlu0 %v554, 16
        %v1332 = vpop.permute.xlu0 %1331
        %v1335 = vsub.f32 %v549, %v1330
        %v1336 = vsub.f32 %v554, %v1332
        %v1337 = vadd.f32 %v1238, %v1321
        %v1338 = vadd.f32 %v1243, %v1326
        %1341 = vrot.lane.b32.xlu0 %v1335, 112
        %v1342 = vpop.permute.xlu0 %1341
        %1343 = vrot.lane.b32.xlu0 %v1336, 112
        %v1344 = vpop.permute.xlu0 %1343
        %1347 = vmatprep.subr.mxu0 0.0
        %1348 = vmatpush1.msra.mxu0 %v1342
        %1349 = vmatprep.subr.mxu0 0.0
        %1350 = vmatpush1.msra.mxu0 %v1344
        %1351 = vmatprep.subr.mxu0 0.0
        %1352 = vmatpush1.msra.mxu0 0.0
        %1353 = vmatprep.subr.mxu0 0.0
        %1354 = vmatpush1.msra.mxu0 0.0
        %1355 = vmatprep.subr.mxu0 0.0
        %1356 = vmatpush1.msra.mxu0 0.0
        %1357 = vmatprep.subr.mxu0 0.0
        %1358 = vmatpush1.msra.mxu0 0.0
        %1359 = vmatprep.subr.mxu0 0.0
        %1360 = vmatpush1.msra.mxu0 0.0
        %1361 = vmatprep.subr.mxu0 0.0
        %1362 = vmatpush1.msra.mxu0 0.0
        %1363 = vmatprep.subr.mxu0 0.0
        %1364 = vmatpush1.msra.mxu0 0.0
        %1365 = vmatprep.subr.mxu0 0.0
        %1366 = vmatpush1.msra.mxu0 0.0
        %1367 = vmatprep.subr.mxu0 0.0
        %1368 = vmatpush1.msra.mxu0 0.0
        %1369 = vmatprep.subr.mxu0 0.0
        %1370 = vmatpush1.msra.mxu0 0.0
        %1371 = vmatprep.subr.mxu0 0.0
        %1372 = vmatpush1.msra.mxu0 0.0
        %1373 = vmatprep.subr.mxu0 0.0
        %1374 = vmatpush1.msra.mxu0 0.0
        %1375 = vmatprep.subr.mxu0 0.0
        %1376 = vmatpush1.msra.mxu0 0.0
        %1377 = vmatprep.subr.mxu0 0.0
        %1378 = vmatpush1.msra.mxu0 0.0
        %1379 = vmatprep.subr.mxu0 0.0
        %1380 = vmatpush1.msra.mxu0 0.0
        %1381 = vmatprep.subr.mxu0 0.0
        %1382 = vmatpush1.msra.mxu0 0.0
        %1383 = vmatprep.subr.mxu0 0.0
        %1384 = vmatpush1.msra.mxu0 0.0
        %1385 = vmatprep.subr.mxu0 0.0
        %1386 = vmatpush1.msra.mxu0 0.0
        %1387 = vmatprep.subr.mxu0 0.0
        %1388 = vmatpush1.msra.mxu0 0.0
        %1389 = vmatprep.subr.mxu0 0.0
        %1390 = vmatpush1.msra.mxu0 0.0
        %1391 = vmatprep.subr.mxu0 0.0
        %1392 = vmatpush1.msra.mxu0 0.0
        %1393 = vmatprep.subr.mxu0 0.0
        %1394 = vmatpush1.msra.mxu0 0.0
        %1395 = vmatprep.subr.mxu0 0.0
        %1396 = vmatpush1.msra.mxu0 0.0
        %1397 = vmatprep.subr.mxu0 0.0
        %1398 = vmatpush1.msra.mxu0 0.0
        %1399 = vmatprep.subr.mxu0 0.0
        %1400 = vmatpush1.msra.mxu0 0.0
        %1401 = vmatprep.subr.mxu0 0.0
        %1402 = vmatpush1.msra.mxu0 0.0
        %1403 = vmatprep.subr.mxu0 0.0
        %1404 = vmatpush1.msra.mxu0 0.0
        %1405 = vmatprep.subr.mxu0 0.0
        %1406 = vmatpush1.msra.mxu0 0.0
        %1407 = vmatprep.subr.mxu0 0.0
        %1408 = vmatpush1.msra.mxu0 0.0
        %1409 = vmatprep.subr.mxu0 0.0
        %1410 = vmatpush1.msra.mxu0 0.0
        %1411 = vmatprep.mubr.f32.mxu0 0.0
        %1412 = vmatmul.mubr.f32.gmra.mrb[0].mxu0 %v746
        %v1413 = vpop.f32.mrb[0].mxu0
        %v1414 = vadd.f32 %v1238, %v1413
        %v1415 = vpop.f32.mrb[0].mxu0
        %1416 = vmatprep.mubr.f32.mxu0 0.0
        %1417 = vmatmul.mubr.f32.gmra.mrb[0].mxu0 %v749
        %v1418 = vpop.f32.mrb[0].mxu0
        %v1419 = vadd.f32 %v1243, %v1418
        %v1420 = vpop.f32.mrb[0].mxu0
        %1421 = vdwg.mxu0
        %v1422 = vsub.f32 %v1414, %v1321
        %v1423 = vsub.f32 %v1419, %v1326
        %s1424 = scalar_lea.vmem %s380, 32 [#allocation5]
        %v1425 = vld [vmem:[%s1424] sm:$0xff]
        %v1426 = vld [vmem:[%s1424 + $0x8] sm:$0xff]
        %v1427 = vld [vmem:[%s1424 + $0x10] sm:$0xff]
        %v1428 = vld [vmem:[%s1424 + $0x18] sm:$0xff]
        %v1429 = vsub.f32 %v1425, %v1337
        %v1430 = vsub.f32 %v1426, %v1338
        %v1431 = vmul.f32 %v453, %v1429
        %v1432 = vmul.f32 %v454, %v1430
        %v1433 = vadd.f32 %v1337, %v1431
        %v1434 = vadd.f32 %v1338, %v1432
        %v1435 = vsub.f32 %v1427, %v1422
        %v1436 = vsub.f32 %v1428, %v1423
        %v1437 = vmul.f32 %v453, %v1435
        %v1438 = vmul.f32 %v454, %v1436
        %v1439 = vadd.f32 %v1422, %v1437
        %v1440 = vadd.f32 %v1423, %v1438
        %1441 = vmatprep.subr.mxu0 0.0
        %1442 = vmatpush1.msra.mxu0 %v1433
        %1443 = vmatprep.subr.mxu0 0.0
        %1444 = vmatpush1.msra.mxu0 %v1434
        %1445 = vmatprep.subr.mxu0 0.0
        %1446 = vmatpush1.msra.mxu0 0.0
        %1447 = vmatprep.subr.mxu0 0.0
        %1448 = vmatpush1.msra.mxu0 0.0
        %1449 = vmatprep.subr.mxu0 0.0
        %1450 = vmatpush1.msra.mxu0 0.0
        %1451 = vmatprep.subr.mxu0 0.0
        %1452 = vmatpush1.msra.mxu0 0.0
        %1453 = vmatprep.subr.mxu0 0.0
        %1454 = vmatpush1.msra.mxu0 0.0
        %1455 = vmatprep.subr.mxu0 0.0
        %1456 = vmatpush1.msra.mxu0 0.0
        %1457 = vmatprep.subr.mxu0 0.0
        %1458 = vmatpush1.msra.mxu0 0.0
        %1459 = vmatprep.subr.mxu0 0.0
        %1460 = vmatpush1.msra.mxu0 0.0
        %1461 = vmatprep.subr.mxu0 0.0
        %1462 = vmatpush1.msra.mxu0 0.0
        %1463 = vmatprep.subr.mxu0 0.0
        %1464 = vmatpush1.msra.mxu0 0.0
        %1465 = vmatprep.subr.mxu0 0.0
        %1466 = vmatpush1.msra.mxu0 0.0
        %1467 = vmatprep.subr.mxu0 0.0
        %1468 = vmatpush1.msra.mxu0 0.0
        %1469 = vmatprep.subr.mxu0 0.0
        %1470 = vmatpush1.msra.mxu0 0.0
        %1471 = vmatprep.subr.mxu0 0.0
        %1472 = vmatpush1.msra.mxu0 0.0
        %1473 = vmatprep.subr.mxu0 0.0
        %1474 = vmatpush1.msra.mxu0 0.0
        %1475 = vmatprep.subr.mxu0 0.0
        %1476 = vmatpush1.msra.mxu0 0.0
        %1477 = vmatprep.subr.mxu0 0.0
        %1478 = vmatpush1.msra.mxu0 0.0
        %1479 = vmatprep.subr.mxu0 0.0
        %1480 = vmatpush1.msra.mxu0 0.0
        %1481 = vmatprep.subr.mxu0 0.0
        %1482 = vmatpush1.msra.mxu0 0.0
        %1483 = vmatprep.subr.mxu0 0.0
        %1484 = vmatpush1.msra.mxu0 0.0
        %1485 = vmatprep.subr.mxu0 0.0
        %1486 = vmatpush1.msra.mxu0 0.0
        %1487 = vmatprep.subr.mxu0 0.0
        %1488 = vmatpush1.msra.mxu0 0.0
        %1489 = vmatprep.subr.mxu0 0.0
        %1490 = vmatpush1.msra.mxu0 0.0
        %1491 = vmatprep.subr.mxu0 0.0
        %1492 = vmatpush1.msra.mxu0 0.0
        %1493 = vmatprep.subr.mxu0 0.0
        %1494 = vmatpush1.msra.mxu0 0.0
        %1495 = vmatprep.subr.mxu0 0.0
        %1496 = vmatpush1.msra.mxu0 0.0
        %1497 = vmatprep.subr.mxu0 0.0
        %1498 = vmatpush1.msra.mxu0 0.0
        %1499 = vmatprep.subr.mxu0 0.0
        %1500 = vmatpush1.msra.mxu0 0.0
        %1501 = vmatprep.subr.mxu0 0.0
        %1502 = vmatpush1.msra.mxu0 0.0
        %1503 = vmatprep.subr.mxu0 0.0
        %1504 = vmatpush1.msra.mxu0 0.0
        %1505 = vmatprep.mubr.f32.mxu0 0.0
        %1506 = vmatmul.mubr.f32.gmra.mrb[0].mxu0 %v558
        %v1507 = vpop.f32.mrb[0].mxu0
        %v1508 = vadd.f32 0.0, %v1507
        %v1509 = vpop.f32.mrb[0].mxu0
        %1510 = vmatprep.mubr.f32.mxu0 0.0
        %1511 = vmatmul.mubr.f32.gmra.mrb[0].mxu0 %v561
        %v1512 = vpop.f32.mrb[0].mxu0
        %v1513 = vadd.f32 0.0, %v1512
        %v1514 = vpop.f32.mrb[0].mxu0
        %1515 = vdwg.mxu0
        %1516 = vmatprep.subr.mxu0 0.0
        %1517 = vmatpush1.msra.mxu0 %v1439
        %1518 = vmatprep.subr.mxu0 0.0
        %1519 = vmatpush1.msra.mxu0 %v1440
        %1520 = vmatprep.subr.mxu0 0.0
        %1521 = vmatpush1.msra.mxu0 0.0
        %1522 = vmatprep.subr.mxu0 0.0
        %1523 = vmatpush1.msra.mxu0 0.0
        %1524 = vmatprep.subr.mxu0 0.0
        %1525 = vmatpush1.msra.mxu0 0.0
        %1526 = vmatprep.subr.mxu0 0.0
        %1527 = vmatpush1.msra.mxu0 0.0
        %1528 = vmatprep.subr.mxu0 0.0
        %1529 = vmatpush1.msra.mxu0 0.0
        %1530 = vmatprep.subr.mxu0 0.0
        %1531 = vmatpush1.msra.mxu0 0.0
        %1532 = vmatprep.subr.mxu0 0.0
        %1533 = vmatpush1.msra.mxu0 0.0
        %1534 = vmatprep.subr.mxu0 0.0
        %1535 = vmatpush1.msra.mxu0 0.0
        %1536 = vmatprep.subr.mxu0 0.0
        %1537 = vmatpush1.msra.mxu0 0.0
        %1538 = vmatprep.subr.mxu0 0.0
        %1539 = vmatpush1.msra.mxu0 0.0
        %1540 = vmatprep.subr.mxu0 0.0
        %1541 = vmatpush1.msra.mxu0 0.0
        %1542 = vmatprep.subr.mxu0 0.0
        %1543 = vmatpush1.msra.mxu0 0.0
        %1544 = vmatprep.subr.mxu0 0.0
        %1545 = vmatpush1.msra.mxu0 0.0
        %1546 = vmatprep.subr.mxu0 0.0
        %1547 = vmatpush1.msra.mxu0 0.0
        %1548 = vmatprep.subr.mxu0 0.0
        %1549 = vmatpush1.msra.mxu0 0.0
        %1550 = vmatprep.subr.mxu0 0.0
        %1551 = vmatpush1.msra.mxu0 0.0
        %1552 = vmatprep.subr.mxu0 0.0
        %1553 = vmatpush1.msra.mxu0 0.0
        %1554 = vmatprep.subr.mxu0 0.0
        %1555 = vmatpush1.msra.mxu0 0.0
        %1556 = vmatprep.subr.mxu0 0.0
        %1557 = vmatpush1.msra.mxu0 0.0
        %1558 = vmatprep.subr.mxu0 0.0
        %1559 = vmatpush1.msra.mxu0 0.0
        %1560 = vmatprep.subr.mxu0 0.0
        %1561 = vmatpush1.msra.mxu0 0.0
        %1562 = vmatprep.subr.mxu0 0.0
        %1563 = vmatpush1.msra.mxu0 0.0
        %1564 = vmatprep.subr.mxu0 0.0
        %1565 = vmatpush1.msra.mxu0 0.0
        %1566 = vmatprep.subr.mxu0 0.0
        %1567 = vmatpush1.msra.mxu0 0.0
        %1568 = vmatprep.subr.mxu0 0.0
        %1569 = vmatpush1.msra.mxu0 0.0
        %1570 = vmatprep.subr.mxu0 0.0
        %1571 = vmatpush1.msra.mxu0 0.0
        %1572 = vmatprep.subr.mxu0 0.0
        %1573 = vmatpush1.msra.mxu0 0.0
        %1574 = vmatprep.subr.mxu0 0.0
        %1575 = vmatpush1.msra.mxu0 0.0
        %1576 = vmatprep.subr.mxu0 0.0
        %1577 = vmatpush1.msra.mxu0 0.0
        %1578 = vmatprep.subr.mxu0 0.0
        %1579 = vmatpush1.msra.mxu0 0.0
        %1580 = vmatprep.mubr.f32.mxu0 0.0
        %1581 = vmatmul.mubr.f32.gmra.mrb[0].mxu0 %v647
        %v1582 = vpop.f32.mrb[0].mxu0
        %v1583 = vadd.f32 0.0, %v1582
        %v1584 = vpop.f32.mrb[0].mxu0
        %1585 = vmatprep.mubr.f32.mxu0 0.0
        %1586 = vmatmul.mubr.f32.gmra.mrb[0].mxu0 %v650
        %v1587 = vpop.f32.mrb[0].mxu0
        %v1588 = vadd.f32 0.0, %v1587
        %v1589 = vpop.f32.mrb[0].mxu0
        %1590 = vdwg.mxu0
        %v1591 = vadd.f32 %v1433, %v1439
        %v1592 = vadd.f32 %v1434, %v1440
        %1593 = vmatprep.subr.mxu0 0.0
        %1594 = vmatpush1.msra.mxu0 %v1591
        %1595 = vmatprep.subr.mxu0 0.0
        %1596 = vmatpush1.msra.mxu0 %v1592
        %1597 = vmatprep.subr.mxu0 0.0
        %1598 = vmatpush1.msra.mxu0 0.0
        %1599 = vmatprep.subr.mxu0 0.0
        %1600 = vmatpush1.msra.mxu0 0.0
        %1601 = vmatprep.subr.mxu0 0.0
        %1602 = vmatpush1.msra.mxu0 0.0
        %1603 = vmatprep.subr.mxu0 0.0
        %1604 = vmatpush1.msra.mxu0 0.0
        %1605 = vmatprep.subr.mxu0 0.0
        %1606 = vmatpush1.msra.mxu0 0.0
        %1607 = vmatprep.subr.mxu0 0.0
        %1608 = vmatpush1.msra.mxu0 0.0
        %1609 = vmatprep.subr.mxu0 0.0
        %1610 = vmatpush1.msra.mxu0 0.0
        %1611 = vmatprep.subr.mxu0 0.0
        %1612 = vmatpush1.msra.mxu0 0.0
        %1613 = vmatprep.subr.mxu0 0.0
        %1614 = vmatpush1.msra.mxu0 0.0
        %1615 = vmatprep.subr.mxu0 0.0
        %1616 = vmatpush1.msra.mxu0 0.0
        %1617 = vmatprep.subr.mxu0 0.0
        %1618 = vmatpush1.msra.mxu0 0.0
        %1619 = vmatprep.subr.mxu0 0.0
        %1620 = vmatpush1.msra.mxu0 0.0
        %1621 = vmatprep.subr.mxu0 0.0
        %1622 = vmatpush1.msra.mxu0 0.0
        %1623 = vmatprep.subr.mxu0 0.0
        %1624 = vmatpush1.msra.mxu0 0.0
        %1625 = vmatprep.subr.mxu0 0.0
        %1626 = vmatpush1.msra.mxu0 0.0
        %1627 = vmatprep.subr.mxu0 0.0
        %1628 = vmatpush1.msra.mxu0 0.0
        %1629 = vmatprep.subr.mxu0 0.0
        %1630 = vmatpush1.msra.mxu0 0.0
        %1631 = vmatprep.subr.mxu0 0.0
        %1632 = vmatpush1.msra.mxu0 0.0
        %1633 = vmatprep.subr.mxu0 0.0
        %1634 = vmatpush1.msra.mxu0 0.0
        %1635 = vmatprep.subr.mxu0 0.0
        %1636 = vmatpush1.msra.mxu0 0.0
        %1637 = vmatprep.subr.mxu0 0.0
        %1638 = vmatpush1.msra.mxu0 0.0
        %1639 = vmatprep.subr.mxu0 0.0
        %1640 = vmatpush1.msra.mxu0 0.0
        %1641 = vmatprep.subr.mxu0 0.0
        %1642 = vmatpush1.msra.mxu0 0.0
        %1643 = vmatprep.subr.mxu0 0.0
        %1644 = vmatpush1.msra.mxu0 0.0
        %1645 = vmatprep.subr.mxu0 0.0
        %1646 = vmatpush1.msra.mxu0 0.0
        %1647 = vmatprep.subr.mxu0 0.0
        %1648 = vmatpush1.msra.mxu0 0.0
        %1649 = vmatprep.subr.mxu0 0.0
        %1650 = vmatpush1.msra.mxu0 0.0
        %1651 = vmatprep.subr.mxu0 0.0
        %1652 = vmatpush1.msra.mxu0 0.0
        %1653 = vmatprep.subr.mxu0 0.0
        %1654 = vmatpush1.msra.mxu0 0.0
        %1655 = vmatprep.subr.mxu0 0.0
        %1656 = vmatpush1.msra.mxu0 0.0
        %1657 = vmatprep.mubr.f32.mxu0 0.0
        %1658 = vmatmul.mubr.f32.gmra.mrb[0].mxu0 %v746
        %v1659 = vpop.f32.mrb[0].mxu0
        %v1660 = vadd.f32 0.0, %v1659
        %v1661 = vpop.f32.mrb[0].mxu0
        %1662 = vmatprep.mubr.f32.mxu0 0.0
        %1663 = vmatmul.mubr.f32.gmra.mrb[0].mxu0 %v749
        %v1664 = vpop.f32.mrb[0].mxu0
        %v1665 = vadd.f32 0.0, %v1664
        %v1666 = vpop.f32.mrb[0].mxu0
        %1667 = vdwg.mxu0
        %v1668 = vsub.f32 %v1508, %v1583
        %v1669 = vsub.f32 %v1513, %v1588
        %v1670 = vsub.f32 %v1660, %v1508
        %v1671 = vsub.f32 %v1665, %v1513
        %v1672 = vsub.f32 %v1670, %v1583
        %v1673 = vsub.f32 %v1671, %v1588
        %1676 = vrot.lane.b32.xlu0 %v1672, 16
        %v1677 = vpop.permute.xlu0 %1676
        %1678 = vrot.lane.b32.xlu0 %v1673, 16
        %v1679 = vpop.permute.xlu0 %1678
        %v1682 = vsel %vm459, %v1668, %v1677
        %v1683 = vsel %vm459, %v1669, %v1679
        %v1685 = vsel %vm1087, %v1682, 0
        %v1688 = vsel %vm1087, %v1683, 0
        %1690 = vmatprep.subr.mxu0 0.0
        %1691 = vmatpush1.msra.mxu0 %v443
        %1692 = vmatprep.subr.mxu0 0.0
        %1693 = vmatpush1.msra.mxu0 %v444
        %1694 = vmatprep.subr.mxu0 0.0
        %1695 = vmatpush1.msra.mxu0 %v445
        %1696 = vmatprep.subr.mxu0 0.0
        %1697 = vmatpush1.msra.mxu0 %v446
        %1698 = vmatprep.subr.mxu0 0.0
        %1699 = vmatpush1.msra.mxu0 0.0
        %1700 = vmatprep.subr.mxu0 0.0
        %1701 = vmatpush1.msra.mxu0 0.0
        %1702 = vmatprep.subr.mxu0 0.0
        %1703 = vmatpush1.msra.mxu0 0.0
        %1704 = vmatprep.subr.mxu0 0.0
        %1705 = vmatpush1.msra.mxu0 0.0
        %1706 = vmatprep.subr.mxu0 0.0
        %1707 = vmatpush1.msra.mxu0 0.0
        %1708 = vmatprep.subr.mxu0 0.0
        %1709 = vmatpush1.msra.mxu0 0.0
        %1710 = vmatprep.subr.mxu0 0.0
        %1711 = vmatpush1.msra.mxu0 0.0
        %1712 = vmatprep.subr.mxu0 0.0
        %1713 = vmatpush1.msra.mxu0 0.0
        %1714 = vmatprep.subr.mxu0 0.0
        %1715 = vmatpush1.msra.mxu0 0.0
        %1716 = vmatprep.subr.mxu0 0.0
        %1717 = vmatpush1.msra.mxu0 0.0
        %1718 = vmatprep.subr.mxu0 0.0
        %1719 = vmatpush1.msra.mxu0 0.0
        %1720 = vmatprep.subr.mxu0 0.0
        %1721 = vmatpush1.msra.mxu0 0.0
        %1722 = vmatprep.subr.mxu0 0.0
        %1723 = vmatpush1.msra.mxu0 0.0
        %1724 = vmatprep.subr.mxu0 0.0
        %1725 = vmatpush1.msra.mxu0 0.0
        %1726 = vmatprep.subr.mxu0 0.0
        %1727 = vmatpush1.msra.mxu0 0.0
        %1728 = vmatprep.subr.mxu0 0.0
        %1729 = vmatpush1.msra.mxu0 0.0
        %1730 = vmatprep.subr.mxu0 0.0
        %1731 = vmatpush1.msra.mxu0 0.0
        %1732 = vmatprep.subr.mxu0 0.0
        %1733 = vmatpush1.msra.mxu0 0.0
        %1734 = vmatprep.subr.mxu0 0.0
        %1735 = vmatpush1.msra.mxu0 0.0
        %1736 = vmatprep.subr.mxu0 0.0
        %1737 = vmatpush1.msra.mxu0 0.0
        %1738 = vmatprep.subr.mxu0 0.0
        %1739 = vmatpush1.msra.mxu0 0.0
        %1740 = vmatprep.subr.mxu0 0.0
        %1741 = vmatpush1.msra.mxu0 0.0
        %1742 = vmatprep.subr.mxu0 0.0
        %1743 = vmatpush1.msra.mxu0 0.0
        %1744 = vmatprep.subr.mxu0 0.0
        %1745 = vmatpush1.msra.mxu0 0.0
        %1746 = vmatprep.subr.mxu0 0.0
        %1747 = vmatpush1.msra.mxu0 0.0
        %1748 = vmatprep.subr.mxu0 0.0
        %1749 = vmatpush1.msra.mxu0 0.0
        %1750 = vmatprep.subr.mxu0 0.0
        %1751 = vmatpush1.msra.mxu0 0.0
        %1752 = vmatprep.subr.mxu0 0.0
        %1753 = vmatpush1.msra.mxu0 0.0
        %1754 = vmatprep.mubr.f32.mxu0 0.0
        %1755 = vmatmul.mubr.f32.gmra.mrb[0].mxu0 %v1685
        %v1756 = vpop.f32.mrb[0].mxu0
        %v1757 = vadd.f32 0.0, %v1756
        %v1758 = vpop.f32.mrb[0].mxu0
        %1759 = vmatprep.mubr.f32.mxu0 0.0
        %1760 = vmatmul.mubr.f32.gmra.mrb[0].mxu0 %v1688
        %v1761 = vpop.f32.mrb[0].mxu0
        %v1762 = vadd.f32 0.0, %v1761
        %v1763 = vpop.f32.mrb[0].mxu0
        %1764 = vdwg.mxu0
        %s1765 = scalar_lea.vmem %s437, 16 [#allocation14]
        %1766 = vst [vmem:[%s1765] sm:$0xff] %v1757
        %1767 = vst [vmem:[%s1765 + $0x8] sm:$0xff] %v1762
        %s1768 = sand.u32 %s216, 1
        %s1769 = scalar_lea.sflag [#allocation4], %s1768
        %s1770 = sand.u32 %s216, 1
        %s1771 = smul.addr %s1770, 32
        %s1772 = scalar_lea.vmem [#allocation14], %s1771
        // Predicated region
        $region81: #{tpu_custom_call.1} parent=51 // pred_check
          %p1773 = pneg %p226
        $region82: #{tpu_custom_call.1} parent=51 // pred_check_branch
          %1775 = sbr.rel (%p1773) target = $region84
        $region83: #{tpu_custom_call.1} parent=51 // pred_region
          %s1776 = smul.u32 2, %s30
          %s1778 = ssub.s32 512, 512
          %1779 = vsyncadd %s1769, %s1778
          %s1780 = smul.addr %s1776, 2
          %s1781 = smul.addr %s1780, 128
          %s1782 = scalar_lea.hbm %s8, %s1781
          %s1783 = sshll.u32 %s1772, 4
          %s1784 = int_to_ptr.vmem [resolvable:$true] %s1783
          %1789 = dma.vmem_to_hbm [thread:$0]  %s1784, 512, %s1782, %s1769, 128, 128, 8
        $region84: #{tpu_custom_call.1} parent=51 // pred_fallthru
          _
      $region52: #{tpu_custom_call.1} parent=5 // pred_fallthru
        _
      %p1790 = scmp.le.s32.totalorder 2, %s25
      // Predicated region
      $region85: #{tpu_custom_call.1} parent=5 // pred_check
        %p1791 = pneg %p1790
      $region86: #{tpu_custom_call.1} parent=5 // pred_check_branch
        %1793 = sbr.rel (%p1791) target = $region88
      $region87: #{tpu_custom_call.1} parent=5 // pred_region
        %s1794 = ssub.s32 %s25, 2
        // Predicated region
        $region89: #{tpu_custom_call.1} parent=87 // pred_check
          %p1795 = pneg %p232
        $region90: #{tpu_custom_call.1} parent=87 // pred_check_branch
          %1797 = sbr.rel (%p1795) target = $region92
        $region91: #{tpu_custom_call.1} parent=87 // pred_region
          %s1798 = sand.u32 %s217, 1
          %s1799 = scalar_lea.sflag [#allocation4], %s1798
          %s1800 = sand.u32 %s217, 1
          %s1801 = smul.addr %s1800, 32
          %s1802 = scalar_lea.vmem [#allocation14], %s1801
          %1803 = dma.done %s1799, 512
        $region92: #{tpu_custom_call.1} parent=87 // pred_fallthru
          _
      $region88: #{tpu_custom_call.1} parent=5 // pred_fallthru
        _
    $region6: #{tpu_custom_call.1} parent=1 // loop_footer
      %s29 = sadd.s32 1, %s25
    $region7: #{tpu_custom_call.1} parent=1 // loop_footer_branch
      %24 = sbr.rel target = $region3
    $region8: #{tpu_custom_call.1} parent=1 // loop_exit
      _
    %1804 = vsyncpa [#allocation3], 1
    %s1805 = scalar_lea.sflag [#allocation3], 1
    %1806 = vsyncpa %s1805, 1
    %1807 = vsyncpa [#allocation6], 1
    %s1808 = scalar_lea.sflag [#allocation6], 1
    %1809 = vsyncpa %s1808, 1
    %1810 = vsyncpa [#allocation9], 1
    %1811 = vsyncpa [#allocation12], 1
    %1812 = vsyncpa [#allocation4], 1
    %s1813 = scalar_lea.sflag [#allocation4], 1
    %1814 = vsyncpa %s1813, 1

</llo_original>
